<compile_context>
chip_gen: v6e
topology: v6e:2x2x1
jax: 0.10.0
libtpu: 0.0.40
codegen_flags: <defaults>
</compile_context>

<pallas_src>
import functools
import math

import jax
import jax.numpy as jnp
from jax import lax
from jax.experimental import pallas as pl
from jax.experimental.pallas import tpu as pltpu

EPS = 1e-5
NEG_INF = -1e30

# Tile candidates (first exact divisor wins; fall back to the full dim so toy
# shapes always compile -- full-dim blocks are always legal).
_ROW_TILES = (1024, 512, 256, 128, 64, 32, 16, 8)           # second-minor dims
_LOGIT_ROW_TILES = (2048, 1024, 512, 256, 128, 64, 32, 16, 8)
_LANE_TILES = (1024, 768, 512, 384, 256, 128)               # output-column dims
_K_TILES = (2048, 1536, 1024, 768, 512, 384, 256, 128)      # contraction dims
_SEQ_TILES = (256, 128)                                     # flash q/kv tiles
_VOCAB_TILES = (2048, 1024, 512, 384, 256, 128)


def _pick_tile(dim, candidates):
    for t in candidates:
        if t <= dim and dim % t == 0:
            return t
    return dim


def _pick_tile_ceil(dim, candidates):
    # Like _pick_tile, but allows a non-dividing tile (partial final block).
    for t in candidates:
        if t <= dim and dim % t == 0:
            return t
    for t in candidates:
        if t <= dim:
            return t
    return dim


def _round_up(x, m):
    return ((x + m - 1) // m) * m


@functools.lru_cache(maxsize=None)
def _vmem_limit_bytes():
    # Generation-aware VMEM budget: ~3/4 of physical VMEM, capped with
    # headroom (v5e/v6e: 128 MiB -> 96 MiB; v7x: 64 MiB -> 48 MiB).
    try:
        cap = int(pltpu.get_tpu_info().vmem_capacity_bytes)
    except Exception:
        cap = 64 * 1024 * 1024
    return max(32 * 1024 * 1024, min((cap * 3) // 4, 96 * 1024 * 1024))


def _cparams(sem):
    return pltpu.CompilerParams(dimension_semantics=sem,
                                vmem_limit_bytes=_vmem_limit_bytes())


# ----------------------------------------------------------------------------
# Pallas kernels
# ----------------------------------------------------------------------------
def _ln_linear_kernel(x_ref, g_ref, b_ref, w_ref, bias_ref, o_ref, xn_ref,
                      *, activation):
    """out = act(LayerNorm(x) @ W + bias); LN is hoisted to the first n-tile."""
    @pl.when(pl.program_id(1) == 0)
    def _():
        x = x_ref[...].astype(jnp.float32)                    # [TR, H]
        mean = jnp.mean(x, axis=-1, keepdims=True)
        var = jnp.mean(jnp.square(x - mean), axis=-1, keepdims=True)
        xn = (x - mean) * lax.rsqrt(var + EPS)
        xn = xn * g_ref[...].astype(jnp.float32) + b_ref[...].astype(jnp.float32)
        xn_ref[...] = xn.astype(xn_ref.dtype)                 # bf16 scratch

    y = jnp.dot(xn_ref[...], w_ref[...],
                preferred_element_type=jnp.float32)           # [TR, TN] f32 acc
    y = y + bias_ref[...].astype(jnp.float32)
    if activation == "gelu":
        y = jax.nn.gelu(y, approximate=True)                  # GPT-2 tanh GELU
    o_ref[...] = y.astype(o_ref.dtype)


def _linear_residual_kernel(x_ref, w_ref, b_ref, res_ref, o_ref, acc_ref):
    """out = res + x @ W + bias, with the contraction axis tiled on the grid."""
    k = pl.program_id(2)

    @pl.when(k == 0)
    def _():
        acc_ref[...] = res_ref[...].astype(jnp.float32) + b_ref[...].astype(jnp.float32)

    acc_ref[...] += jnp.dot(x_ref[...], w_ref[...],
                            preferred_element_type=jnp.float32)

    @pl.when(k == pl.num_programs(2) - 1)
    def _():
        o_ref[...] = acc_ref[...].astype(o_ref.dtype)


def _flash_attn_kernel(q_ref, k_ref, v_ref, o_ref, m_ref, l_ref, acc_ref,
                       *, tq, tk):
    """Causal flash attention; grid = (head-groups, q-tiles, kv-tiles)."""
    qi = pl.program_id(1)
    ki = pl.program_id(2)

    @pl.when(ki == 0)
    def _():
        m_ref[...] = jnp.full(m_ref.shape, NEG_INF, jnp.float32)
        l_ref[...] = jnp.zeros_like(l_ref)
        acc_ref[...] = jnp.zeros_like(acc_ref)

    def _update(mask_diag):
        # 1/sqrt(dh) is folded into the Q projection weights (no rescale here).
        s = jnp.einsum("bqd,bkd->bqk", q_ref[...], k_ref[...],
                       preferred_element_type=jnp.float32)    # [hb, tq, tk]
        if mask_diag:
            row = qi * tq + lax.broadcasted_iota(jnp.int32, s.shape, 1)
            col = ki * tk + lax.broadcasted_iota(jnp.int32, s.shape, 2)
            s = jnp.where(row >= col, s, NEG_INF)

        m_prev = m_ref[...]                                    # [hb, tq, 128]
        m_new = jnp.maximum(m_prev, jnp.max(s, axis=-1, keepdims=True))
        alpha = jnp.exp(m_prev - m_new)
        p = jnp.exp(s - m_new[..., :1])
        l_ref[...] = alpha * l_ref[...] + jnp.sum(p, axis=-1, keepdims=True)
        acc_ref[...] = alpha[..., :1] * acc_ref[...] + jnp.einsum(
            "bqk,bkd->bqd", p.astype(v_ref.dtype), v_ref[...],
            preferred_element_type=jnp.float32)
        m_ref[...] = m_new

    # Strictly-below-diagonal tiles need no causal mask; the diagonal tile
    # does; above-diagonal tiles are skipped (and never re-DMAed thanks to the
    # clamped K/V index_maps).
    @pl.when(ki < qi)
    def _():
        _update(False)

    @pl.when(ki == qi)
    def _():
        _update(True)

    @pl.when(ki == pl.num_programs(2) - 1)
    def _():
        inv_l = pl.reciprocal(l_ref[...][..., :1], approx=True)
        o_ref[...] = (acc_ref[...] * inv_l).astype(o_ref.dtype)


def _layernorm_kernel(x_ref, g_ref, b_ref, o_ref):
    x = x_ref[...].astype(jnp.float32)                         # [TR, H]
    mean = jnp.mean(x, axis=-1, keepdims=True)
    var = jnp.mean(jnp.square(x - mean), axis=-1, keepdims=True)
    y = (x - mean) * lax.rsqrt(var + EPS)
    y = y * g_ref[...].astype(jnp.float32) + b_ref[...].astype(jnp.float32)
    o_ref[...] = y.astype(o_ref.dtype)


def _logits_kernel(x_ref, w_ref, o_ref):
    # logits = x @ tok_emb.T; the weight is pre-transposed ([H, Vp]) so this is
    # a plain MXU matmul with no per-tile RHS transpose.
    o_ref[...] = jnp.dot(x_ref[...], w_ref[...],
                         preferred_element_type=jnp.float32).astype(o_ref.dtype)


# ----------------------------------------------------------------------------
# Pallas wrappers
# ----------------------------------------------------------------------------
def ln_linear(x2d, g, b, w, bias, activation=None):
    R, H = x2d.shape
    N = w.shape[1]
    tr = _pick_tile(R, _ROW_TILES)
    tn = _pick_tile(N, _LANE_TILES)
    kern = functools.partial(_ln_linear_kernel, activation=activation)
    return pl.pallas_call(
        kern,
        out_shape=jax.ShapeDtypeStruct((R, N), x2d.dtype),
        grid=(R // tr, N // tn),
        in_specs=[pl.BlockSpec((tr, H), lambda r, n: (r, 0)),
                  pl.BlockSpec((1, H), lambda r, n: (0, 0)),
                  pl.BlockSpec((1, H), lambda r, n: (0, 0)),
                  pl.BlockSpec((H, tn), lambda r, n: (0, n)),
                  pl.BlockSpec((1, tn), lambda r, n: (0, n))],
        out_specs=pl.BlockSpec((tr, tn), lambda r, n: (r, n)),
        scratch_shapes=[pltpu.VMEM((tr, H), x2d.dtype)],     # LN(x) cache
        compiler_params=_cparams(("parallel", "arbitrary")),
    )(x2d, g.reshape(1, H), b.reshape(1, H), w, bias.reshape(1, N))


def linear_residual(x2d, w, bias, res2d):
    R, K = x2d.shape
    N = w.shape[1]
    tr = _pick_tile(R, _ROW_TILES)
    tn = _pick_tile(N, _LANE_TILES)
    tk = _pick_tile(K, _K_TILES)
    return pl.pallas_call(
        _linear_residual_kernel,
        out_shape=jax.ShapeDtypeStruct((R, N), res2d.dtype),
        grid=(R // tr, N // tn, K // tk),
        in_specs=[pl.BlockSpec((tr, tk), lambda r, n, k: (r, k)),
                  pl.BlockSpec((tk, tn), lambda r, n, k: (k, n)),
                  pl.BlockSpec((1, tn), lambda r, n, k: (0, n)),
                  pl.BlockSpec((tr, tn), lambda r, n, k: (r, n))],
        out_specs=pl.BlockSpec((tr, tn), lambda r, n, k: (r, n)),
        scratch_shapes=[pltpu.VMEM((tr, tn), jnp.float32)],
        compiler_params=_cparams(("parallel", "parallel", "arbitrary")),
    )(x2d, w, bias.reshape(1, N), res2d)


def flash_attention(q, k, v):
    BH, S, dh = q.shape
    tq = _pick_tile(S, _SEQ_TILES)
    tk = tq                              # aligned tiles -> no all-masked rows
    hb = 2 if BH % 2 == 0 else 1         # heads per grid step (MXU pipelining)
    kern = functools.partial(_flash_attn_kernel, tq=tq, tk=tk)
    return pl.pallas_call(
        kern,
        out_shape=jax.ShapeDtypeStruct((BH, S, dh), q.dtype),
        grid=(BH // hb, S // tq, S // tk),
        in_specs=[
            pl.BlockSpec((hb, tq, dh), lambda b, qi, ki: (b, qi, 0)),
            # Clamp the kv block index: above-diagonal iterations reuse the
            # already-resident block, so causally skipped tiles are not DMAed.
            pl.BlockSpec((hb, tk, dh), lambda b, qi, ki: (b, jnp.minimum(ki, qi), 0)),
            pl.BlockSpec((hb, tk, dh), lambda b, qi, ki: (b, jnp.minimum(ki, qi), 0)),
        ],
        out_specs=pl.BlockSpec((hb, tq, dh), lambda b, qi, ki: (b, qi, 0)),
        scratch_shapes=[pltpu.VMEM((hb, tq, 128), jnp.float32),   # m (lane-dense)
                        pltpu.VMEM((hb, tq, 128), jnp.float32),   # l (lane-dense)
                        pltpu.VMEM((hb, tq, dh), jnp.float32)],   # acc
        compiler_params=_cparams(("parallel", "parallel", "arbitrary")),
    )(q, k, v)


def layernorm(x2d, g, b):
    R, H = x2d.shape
    tr = _pick_tile(R, _ROW_TILES)
    return pl.pallas_call(
        _layernorm_kernel,
        out_shape=jax.ShapeDtypeStruct((R, H), x2d.dtype),
        grid=(R // tr,),
        in_specs=[pl.BlockSpec((tr, H), lambda r: (r, 0)),
                  pl.BlockSpec((1, H), lambda r: (0, 0)),
                  pl.BlockSpec((1, H), lambda r: (0, 0))],
        out_specs=pl.BlockSpec((tr, H), lambda r: (r, 0)),
        compiler_params=_cparams(("parallel",)),
    )(x2d, g.reshape(1, H), b.reshape(1, H))


def embedding_sim(x2d, lm_head_t, vocab_size):
    """logits = x @ tok_emb.T using the pre-transposed / 128-padded LM head.

    The row tile is raised toward R so the embedding matrix is streamed from
    HBM ~once; the final vocab block (odd vocab sizes) is a masked store.
    """
    R, H = x2d.shape
    Vp = lm_head_t.shape[1]
    tr = _pick_tile(R, _LOGIT_ROW_TILES)
    tv = _pick_tile_ceil(Vp, _VOCAB_TILES)
    nv = pl.cdiv(vocab_size, tv)
    return pl.pallas_call(
        _logits_kernel,
        out_shape=jax.ShapeDtypeStruct((R, vocab_size), jnp.float32),
        grid=(R // tr, nv),
        in_specs=[pl.BlockSpec((tr, H), lambda r, v: (r, 0)),
                  pl.BlockSpec((H, tv), lambda r, v: (0, v))],
        out_specs=pl.BlockSpec((tr, tv), lambda r, v: (r, v)),
        compiler_params=_cparams(("parallel", "parallel")),
    )(x2d, lm_head_t)


# ----------------------------------------------------------------------------
# Model (GPT-2 decode path)
# ----------------------------------------------------------------------------
def init_params(key, vocab_size, max_seq_len, hidden_size, num_heads, n_layer):
    keys = jax.random.split(key, 2 + 6 * n_layer)
    std = 0.02
    dh = hidden_size // num_heads
    q_scale = 1.0 / math.sqrt(dh)

    def _w(k, shape):
        return jax.random.normal(k, shape, jnp.float32) * std

    tok = _w(keys[0], (vocab_size, hidden_size))               # [V, H] f32
    # Pre-transposed (and lane-padded) LM head so the logits kernel is a plain
    # [tr,H]@[H,tv] matmul and odd vocab sizes tile legally.
    v_pad = _round_up(vocab_size, 128) if vocab_size >= 128 else vocab_size
    lm_head_t = jnp.zeros((hidden_size, v_pad), jnp.float32)
    lm_head_t = lm_head_t.at[:, :vocab_size].set(tok.T)

    p = {
        "tok_emb": tok.astype(jnp.bfloat16),
        "lm_head_t": lm_head_t.astype(jnp.bfloat16),
        "pos_emb": _w(keys[1], (max_seq_len, hidden_size)).astype(jnp.bfloat16),
        "layers": [],
        "ln_f": {"g": jnp.ones((hidden_size,), jnp.float32),
                 "b": jnp.zeros((hidden_size,), jnp.float32)},
    }
    for l in range(n_layer):
        k = keys[2 + 6 * l: 2 + 6 * (l + 1)]
        wqkv = _w(k[0], (hidden_size, 3 * hidden_size))
        # Fold 1/sqrt(dh) into the Q columns of the fused QKV projection so
        # the attention kernel never rescales q.
        wqkv = wqkv.at[:, :hidden_size].multiply(q_scale)
        bqkv = jnp.zeros((3 * hidden_size,), jnp.float32)
        bqkv = bqkv.at[:hidden_size].multiply(q_scale)
        layer = {
            "ln1_g": jnp.ones((hidden_size,), jnp.float32),
            "ln1_b": jnp.zeros((hidden_size,), jnp.float32),
            "wqkv": wqkv.astype(jnp.bfloat16),
            "bqkv": bqkv,
            "wo": _w(k[1], (hidden_size, hidden_size)).astype(jnp.bfloat16),
            "bo": jnp.zeros((hidden_size,), jnp.float32),
            "ln2_g": jnp.ones((hidden_size,), jnp.float32),
            "ln2_b": jnp.zeros((hidden_size,), jnp.float32),
            "w1": _w(k[2], (hidden_size, 4 * hidden_size)).astype(jnp.bfloat16),
            "b1": jnp.zeros((4 * hidden_size,), jnp.float32),
            "w2": _w(k[3], (4 * hidden_size, hidden_size)).astype(jnp.bfloat16),
            "b2": jnp.zeros((hidden_size,), jnp.float32),
        }
        p["layers"].append(layer)
    return p


def _split_heads(qkv, B, S, nh, dh):
    qkv = qkv.reshape(B, S, 3, nh, dh)
    q = qkv[:, :, 0].transpose(0, 2, 1, 3).reshape(B * nh, S, dh)
    k = qkv[:, :, 1].transpose(0, 2, 1, 3).reshape(B * nh, S, dh)
    v = qkv[:, :, 2].transpose(0, 2, 1, 3).reshape(B * nh, S, dh)
    return q, k, v


@functools.partial(jax.jit, static_argnums=(2,))
def decode(params, ids, num_heads):
    # DecoderEmbedding: token + positional embedding (dropout off: eval mode).
    B, S = ids.shape
    V, H = params["tok_emb"].shape
    nh = num_heads
    dh = H // nh

    x = params["tok_emb"][ids] + params["pos_emb"][:S][None, :, :]
    x2d = x.reshape(B * S, H).astype(jnp.bfloat16)

    # Pre-norm transformer blocks (norm_first=True, fused qkv: separate=False).
    for layer in params["layers"]:
        # LN1 fused into the QKV projection (1/sqrt(dh) folded into Q weights).
        qkv = ln_linear(x2d, layer["ln1_g"], layer["ln1_b"],
                        layer["wqkv"], layer["bqkv"])
        q, k, v = _split_heads(qkv, B, S, nh, dh)
        ctx = flash_attention(q, k, v)                             # [B*nh, S, dh]
        ctx2d = ctx.reshape(B, nh, S, dh).transpose(0, 2, 1, 3).reshape(B * S, H)
        # Output projection + bias + residual fused.
        x2d = linear_residual(ctx2d, layer["wo"], layer["bo"], x2d)
        # LN2 + fc1 + GELU fused.
        h1 = ln_linear(x2d, layer["ln2_g"], layer["ln2_b"],
                       layer["w1"], layer["b1"], activation="gelu")
        # fc2 (FFN contraction tiled) + bias + residual fused.
        x2d = linear_residual(h1, layer["w2"], layer["b2"], x2d)

    x2d = layernorm(x2d, params["ln_f"]["g"], params["ln_f"]["b"])
    logits = embedding_sim(x2d, params["lm_head_t"], V)            # [B*S, V] f32
    return logits.reshape(B, S, V)


def forward(params, ids, num_heads):
    # Eval-mode forward with content_generator=False -> {'preds': decode(x)}.
    # TODO(synk): beam_search autoregressive decoding loop not implemented
    # (host-side search control flow, not a kernel).
    return {"preds": decode(params, ids, num_heads)}


# ----------------------------------------------------------------------------
if __name__ == "__main__":
    VOCAB = 64
    MAX_SEQ = 32
    HIDDEN = 32
    HEADS = 4
    N_LAYER = 2
    B, S = 2, 8

    key = jax.random.PRNGKey(0)
    pkey, dkey = jax.random.split(key)
    params = init_params(pkey, VOCAB, MAX_SEQ, HIDDEN, HEADS, N_LAYER)
    ids = jax.random.randint(dkey, (B, S), 0, VOCAB, dtype=jnp.int32)

    out = forward(params, ids, HEADS)
    logits = jax.block_until_ready(out["preds"])
    assert logits.shape == (B, S, VOCAB)
    assert bool(jnp.all(jnp.isfinite(logits)))
    print("KERNEL_OK")
</pallas_src>

<mosaic_0001>
module attributes {stable_mosaic.version = 11 : i64} {
  func.func @_ln_linear_kernel(%arg0: i32, %arg1: i32, %arg2: memref<16x32xbf16, #tpu.memory_space<vmem>>, %arg3: memref<1x32xf32, #tpu.memory_space<vmem>>, %arg4: memref<1x32xf32, #tpu.memory_space<vmem>>, %arg5: memref<32x96xbf16, #tpu.memory_space<vmem>>, %arg6: memref<1x96xf32, #tpu.memory_space<vmem>>, %arg7: memref<16x96xbf16, #tpu.memory_space<vmem>>, %arg8: memref<16x32xbf16, #tpu.memory_space<vmem>>) attributes {dimension_semantics = [#tpu.dimension_semantics<parallel>, #tpu.dimension_semantics<arbitrary>], iteration_bounds = array<i64: 1, 1>, scalar_prefetch = 0 : i64, scratch_operands = 1 : i64, tpu.core_type = #tpu.core_type<tc>, window_params = [{transform_indices = @transform_0, window_bounds = array<i64: 16, 32>}, {pipeline_mode = #tpu.pipeline_mode<synchronous>, transform_indices = @transform_1, window_bounds = array<i64: 1, 32>}, {pipeline_mode = #tpu.pipeline_mode<synchronous>, transform_indices = @transform_2, window_bounds = array<i64: 1, 32>}, {transform_indices = @transform_3, window_bounds = array<i64: 32, 96>}, {transform_indices = @transform_4, window_bounds = array<i64: 1, 96>}, {transform_indices = @transform_5, window_bounds = array<i64: 16, 96>}]} {
    %c0_i32 = arith.constant 0 : i32
    %0 = arith.cmpi eq, %arg1, %c0_i32 : i32
    %1 = arith.extui %0 : i1 to i32
    %c0_i32_0 = arith.constant 0 : i32
    %2 = arith.cmpi ne, %1, %c0_i32_0 : i32
    scf.if %2 {
      %c0_8 = arith.constant 0 : index
      %c0_9 = arith.constant 0 : index
      %11 = vector.load %arg2[%c0_8, %c0_9] : memref<16x32xbf16, #tpu.memory_space<vmem>>, vector<16x32xbf16>
      %12 = arith.extf %11 : vector<16x32xbf16> to vector<16x32xf32>
      %cst_10 = arith.constant dense<0.000000e+00> : vector<16xf32>
      %13 = vector.multi_reduction <add>, %12, %cst_10 [1] : vector<16x32xf32> to vector<16xf32>
      %14 = vector.shape_cast %13 : vector<16xf32> to vector<16x1xf32>
      %cst_11 = arith.constant 3.200000e+01 : f32
      %15 = vector.broadcast %cst_11 : f32 to vector<16x1xf32>
      %16 = arith.divf %14, %15 : vector<16x1xf32>
      %17 = vector.broadcast %16 : vector<16x1xf32> to vector<16x32xf32>
      %18 = arith.subf %12, %17 : vector<16x32xf32>
      %19 = arith.mulf %18, %18 : vector<16x32xf32>
      %cst_12 = arith.constant dense<0.000000e+00> : vector<16xf32>
      %20 = vector.multi_reduction <add>, %19, %cst_12 [1] : vector<16x32xf32> to vector<16xf32>
      %21 = vector.shape_cast %20 : vector<16xf32> to vector<16x1xf32>
      %cst_13 = arith.constant 3.200000e+01 : f32
      %22 = vector.broadcast %cst_13 : f32 to vector<16x1xf32>
      %23 = arith.divf %21, %22 : vector<16x1xf32>
      %24 = vector.broadcast %16 : vector<16x1xf32> to vector<16x32xf32>
      %25 = arith.subf %12, %24 : vector<16x32xf32>
      %cst_14 = arith.constant 9.99999974E-6 : f32
      %26 = vector.broadcast %cst_14 : f32 to vector<16x1xf32>
      %27 = arith.addf %23, %26 : vector<16x1xf32>
      %28 = math.rsqrt %27 : vector<16x1xf32>
      %29 = vector.broadcast %28 : vector<16x1xf32> to vector<16x32xf32>
      %30 = arith.mulf %25, %29 : vector<16x32xf32>
      %c0_15 = arith.constant 0 : index
      %c0_16 = arith.constant 0 : index
      %31 = vector.load %arg3[%c0_15, %c0_16] : memref<1x32xf32, #tpu.memory_space<vmem>>, vector<1x32xf32>
      %32 = vector.broadcast %31 : vector<1x32xf32> to vector<16x32xf32>
      %33 = arith.mulf %30, %32 : vector<16x32xf32>
      %c0_17 = arith.constant 0 : index
      %c0_18 = arith.constant 0 : index
      %34 = vector.load %arg4[%c0_17, %c0_18] : memref<1x32xf32, #tpu.memory_space<vmem>>, vector<1x32xf32>
      %35 = vector.broadcast %34 : vector<1x32xf32> to vector<16x32xf32>
      %36 = arith.addf %33, %35 : vector<16x32xf32>
      %37 = arith.truncf %36 : vector<16x32xf32> to vector<16x32xbf16>
      %c0_19 = arith.constant 0 : index
      %c0_20 = arith.constant 0 : index
      %38 = vector.load %arg8[%c0_19, %c0_20] : memref<16x32xbf16, #tpu.memory_space<vmem>>, vector<16x32xbf16>
      tpu.vector_store %arg8[%c0_19, %c0_20], %37 {strides = array<i32>} : memref<16x32xbf16, #tpu.memory_space<vmem>>, vector<16x32xbf16>,
    } else {
    }
    %c0 = arith.constant 0 : index
    %c0_1 = arith.constant 0 : index
    %3 = vector.load %arg8[%c0, %c0_1] : memref<16x32xbf16, #tpu.memory_space<vmem>>, vector<16x32xbf16>
    %c0_2 = arith.constant 0 : index
    %c0_3 = arith.constant 0 : index
    %4 = vector.load %arg5[%c0_2, %c0_3] : memref<32x96xbf16, #tpu.memory_space<vmem>>, vector<32x96xbf16>
    %cst = arith.constant dense<0.000000e+00> : vector<16x96xf32>
    %5 = tpu.matmul %3, %4, %cst {dimension_numbers = #tpu.dot_dimension_numbers<[1], [0], [0], [1], [0, 0, 1, 1], [], []>} : vector<16x32xbf16>, vector<32x96xbf16>, vector<16x96xf32> -> vector<16x96xf32>
    %c0_4 = arith.constant 0 : index
    %c0_5 = arith.constant 0 : index
    %6 = vector.load %arg6[%c0_4, %c0_5] : memref<1x96xf32, #tpu.memory_space<vmem>>, vector<1x96xf32>
    %7 = vector.broadcast %6 : vector<1x96xf32> to vector<16x96xf32>
    %8 = arith.addf %5, %7 : vector<16x96xf32>
    %9 = arith.truncf %8 : vector<16x96xf32> to vector<16x96xbf16>
    %c0_6 = arith.constant 0 : index
    %c0_7 = arith.constant 0 : index
    %10 = vector.load %arg7[%c0_6, %c0_7] : memref<16x96xbf16, #tpu.memory_space<vmem>>, vector<16x96xbf16>
    tpu.vector_store %arg7[%c0_6, %c0_7], %9 {strides = array<i32>} : memref<16x96xbf16, #tpu.memory_space<vmem>>, vector<16x96xbf16>,
    return
  }
  func.func @transform_0(%arg0: i32, %arg1: i32) -> (i32, i32) {
    %c0_i32 = arith.constant 0 : i32
    %c0_i32_0 = arith.constant 0 : i32
    return %arg0, %c0_i32 : i32, i32
  }
  func.func @transform_1(%arg0: i32, %arg1: i32) -> (i32, i32) {
    %c0_i32 = arith.constant 0 : i32
    %c0_i32_0 = arith.constant 0 : i32
    %c0_i32_1 = arith.constant 0 : i32
    return %c0_i32, %c0_i32_0 : i32, i32
  }
  func.func @transform_2(%arg0: i32, %arg1: i32) -> (i32, i32) {
    %c0_i32 = arith.constant 0 : i32
    %c0_i32_0 = arith.constant 0 : i32
    %c0_i32_1 = arith.constant 0 : i32
    return %c0_i32, %c0_i32_0 : i32, i32
  }
  func.func @transform_3(%arg0: i32, %arg1: i32) -> (i32, i32) {
    %c0_i32 = arith.constant 0 : i32
    %c0_i32_0 = arith.constant 0 : i32
    return %c0_i32, %arg1 : i32, i32
  }
  func.func @transform_4(%arg0: i32, %arg1: i32) -> (i32, i32) {
    %c0_i32 = arith.constant 0 : i32
    %c0_i32_0 = arith.constant 0 : i32
    return %c0_i32, %arg1 : i32, i32
  }
  func.func @transform_5(%arg0: i32, %arg1: i32) -> (i32, i32) {
    %c0_i32 = arith.constant 0 : i32
    return %arg0, %arg1 : i32, i32
  }
}

module attributes {stable_mosaic.version = 11 : i64} {
  func.func @_flash_attn_kernel(%arg0: i32, %arg1: i32, %arg2: i32, %arg3: memref<2x8x8xbf16, #tpu.memory_space<vmem>>, %arg4: memref<2x8x8xbf16, #tpu.memory_space<vmem>>, %arg5: memref<2x8x8xbf16, #tpu.memory_space<vmem>>, %arg6: memref<2x8x8xbf16, #tpu.memory_space<vmem>>, %arg7: memref<2x8x128xf32, #tpu.memory_space<vmem>>, %arg8: memref<2x8x128xf32, #tpu.memory_space<vmem>>, %arg9: memref<2x8x8xf32, #tpu.memory_space<vmem>>) attributes {dimension_semantics = [#tpu.dimension_semantics<parallel>, #tpu.dimension_semantics<parallel>, #tpu.dimension_semantics<arbitrary>], iteration_bounds = array<i64: 4, 1, 1>, scalar_prefetch = 0 : i64, scratch_operands = 3 : i64, tpu.core_type = #tpu.core_type<tc>, window_params = [{transform_indices = @transform_0, window_bounds = array<i64: 2, 8, 8>}, {transform_indices = @transform_1, window_bounds = array<i64: 2, 8, 8>}, {transform_indices = @transform_2, window_bounds = array<i64: 2, 8, 8>}, {transform_indices = @transform_3, window_bounds = array<i64: 2, 8, 8>}]} {
    %c0_i32 = arith.constant 0 : i32
    %0 = arith.cmpi eq, %arg2, %c0_i32 : i32
    %1 = arith.extui %0 : i1 to i32
    %c0_i32_0 = arith.constant 0 : i32
    %2 = arith.cmpi ne, %1, %c0_i32_0 : i32
    scf.if %2 {
      %cst = arith.constant -1.000000e+30 : f32
      %12 = vector.broadcast %cst : f32 to vector<2x8x128xf32>
      %c0 = arith.constant 0 : index
      %c0_5 = arith.constant 0 : index
      %c0_6 = arith.constant 0 : index
      %13 = vector.load %arg7[%c0, %c0_5, %c0_6] : memref<2x8x128xf32, #tpu.memory_space<vmem>>, vector<2x8x128xf32>
      tpu.vector_store %arg7[%c0, %c0_5, %c0_6], %12 {strides = array<i32>} : memref<2x8x128xf32, #tpu.memory_space<vmem>>, vector<2x8x128xf32>,
      %cst_7 = arith.constant 0.000000e+00 : f32
      %14 = vector.broadcast %cst_7 : f32 to vector<2x8x128xf32>
      %c0_8 = arith.constant 0 : index
      %c0_9 = arith.constant 0 : index
      %c0_10 = arith.constant 0 : index
      %15 = vector.load %arg8[%c0_8, %c0_9, %c0_10] : memref<2x8x128xf32, #tpu.memory_space<vmem>>, vector<2x8x128xf32>
      tpu.vector_store %arg8[%c0_8, %c0_9, %c0_10], %14 {strides = array<i32>} : memref<2x8x128xf32, #tpu.memory_space<vmem>>, vector<2x8x128xf32>,
      %cst_11 = arith.constant 0.000000e+00 : f32
      %16 = vector.broadcast %cst_11 : f32 to vector<2x8x8xf32>
      %c0_12 = arith.constant 0 : index
      %c0_13 = arith.constant 0 : index
      %c0_14 = arith.constant 0 : index
      %17 = vector.load %arg9[%c0_12, %c0_13, %c0_14] : memref<2x8x8xf32, #tpu.memory_space<vmem>>, vector<2x8x8xf32>
      tpu.vector_store %arg9[%c0_12, %c0_13, %c0_14], %16 {strides = array<i32>} : memref<2x8x8xf32, #tpu.memory_space<vmem>>, vector<2x8x8xf32>,
    } else {
    }
    %3 = arith.cmpi slt, %arg2, %arg1 : i32
    %4 = arith.extui %3 : i1 to i32
    %c0_i32_1 = arith.constant 0 : i32
    %5 = arith.cmpi ne, %4, %c0_i32_1 : i32
    scf.if %5 {
      %c0 = arith.constant 0 : index
      %c0_5 = arith.constant 0 : index
      %c0_6 = arith.constant 0 : index
      %12 = vector.load %arg3[%c0, %c0_5, %c0_6] : memref<2x8x8xbf16, #tpu.memory_space<vmem>>, vector<2x8x8xbf16>
      %c0_7 = arith.constant 0 : index
      %c0_8 = arith.constant 0 : index
      %c0_9 = arith.constant 0 : index
      %13 = vector.load %arg4[%c0_7, %c0_8, %c0_9] : memref<2x8x8xbf16, #tpu.memory_space<vmem>>, vector<2x8x8xbf16>
      "tpu.trace_start"() <{level = 10 : i32, message = "bqd,bkd->bqk"}> : () -> ()
      %cst = arith.constant dense<0.000000e+00> : vector<2x8x8xf32>
      %14 = tpu.matmul %12, %13, %cst {dimension_numbers = #tpu.dot_dimension_numbers<[2], [2], [1], [1], [0, 0, 0, 1, 1, 1], [0], [0]>} : vector<2x8x8xbf16>, vector<2x8x8xbf16>, vector<2x8x8xf32> -> vector<2x8x8xf32>
      "tpu.trace_stop"() : () -> ()
      %c0_10 = arith.constant 0 : index
      %c0_11 = arith.constant 0 : index
      %c0_12 = arith.constant 0 : index
      %15 = vector.load %arg7[%c0_10, %c0_11, %c0_12] : memref<2x8x128xf32, #tpu.memory_space<vmem>>, vector<2x8x128xf32>
      %cst_13 = arith.constant dense<0xFF800000> : vector<2x8xf32>
      %16 = vector.multi_reduction <maximumf>, %14, %cst_13 [2] : vector<2x8x8xf32> to vector<2x8xf32>
      %17 = vector.shape_cast %16 : vector<2x8xf32> to vector<2x8x1xf32>
      %18 = vector.broadcast %17 : vector<2x8x1xf32> to vector<2x8x128xf32>
      %19 = arith.maximumf %15, %18 : vector<2x8x128xf32>
      %20 = arith.subf %15, %19 : vector<2x8x128xf32>
      %21 = math.exp %20 : vector<2x8x128xf32>
      %22 = vector.extract_strided_slice %19 {offsets = [0, 0, 0], sizes = [2, 8, 1], strides = [1, 1, 1]} : vector<2x8x128xf32> to vector<2x8x1xf32>
      %23 = vector.broadcast %22 : vector<2x8x1xf32> to vector<2x8x8xf32>
      %24 = arith.subf %14, %23 : vector<2x8x8xf32>
      %25 = math.exp %24 : vector<2x8x8xf32>
      %c0_14 = arith.constant 0 : index
      %c0_15 = arith.constant 0 : index
      %c0_16 = arith.constant 0 : index
      %26 = vector.load %arg8[%c0_14, %c0_15, %c0_16] : memref<2x8x128xf32, #tpu.memory_space<vmem>>, vector<2x8x128xf32>
      %27 = arith.mulf %21, %26 : vector<2x8x128xf32>
      %cst_17 = arith.constant dense<0.000000e+00> : vector<2x8xf32>
      %28 = vector.multi_reduction <add>, %25, %cst_17 [2] : vector<2x8x8xf32> to vector<2x8xf32>
      %29 = vector.shape_cast %28 : vector<2x8xf32> to vector<2x8x1xf32>
      %30 = vector.broadcast %29 : vector<2x8x1xf32> to vector<2x8x128xf32>
      %31 = arith.addf %27, %30 : vector<2x8x128xf32>
      %c0_18 = arith.constant 0 : index
      %c0_19 = arith.constant 0 : index
      %c0_20 = arith.constant 0 : index
      %32 = vector.load %arg8[%c0_18, %c0_19, %c0_20] : memref<2x8x128xf32, #tpu.memory_space<vmem>>, vector<2x8x128xf32>
      tpu.vector_store %arg8[%c0_18, %c0_19, %c0_20], %31 {strides = array<i32>} : memref<2x8x128xf32, #tpu.memory_space<vmem>>, vector<2x8x128xf32>,
      %33 = vector.extract_strided_slice %21 {offsets = [0, 0, 0], sizes = [2, 8, 1], strides = [1, 1, 1]} : vector<2x8x128xf32> to vector<2x8x1xf32>
      %c0_21 = arith.constant 0 : index
      %c0_22 = arith.constant 0 : index
      %c0_23 = arith.constant 0 : index
      %34 = vector.load %arg9[%c0_21, %c0_22, %c0_23] : memref<2x8x8xf32, #tpu.memory_space<vmem>>, vector<2x8x8xf32>
      %35 = vector.broadcast %33 : vector<2x8x1xf32> to vector<2x8x8xf32>
      %36 = arith.mulf %35, %34 : vector<2x8x8xf32>
      %37 = arith.truncf %25 : vector<2x8x8xf32> to vector<2x8x8xbf16>
      %c0_24 = arith.constant 0 : index
      %c0_25 = arith.constant 0 : index
      %c0_26 = arith.constant 0 : index
      %38 = vector.load %arg5[%c0_24, %c0_25, %c0_26] : memref<2x8x8xbf16, #tpu.memory_space<vmem>>, vector<2x8x8xbf16>
      "tpu.trace_start"() <{level = 10 : i32, message = "bqk,bkd->bqd"}> : () -> ()
      %cst_27 = arith.constant dense<0.000000e+00> : vector<2x8x8xf32>
      %39 = tpu.matmul %37, %38, %cst_27 {dimension_numbers = #tpu.dot_dimension_numbers<[2], [1], [1], [2], [0, 0, 0, 1, 1, 2], [0], [0]>} : vector<2x8x8xbf16>, vector<2x8x8xbf16>, vector<2x8x8xf32> -> vector<2x8x8xf32>
      "tpu.trace_stop"() : () -> ()
      %40 = arith.addf %36, %39 : vector<2x8x8xf32>
      %c0_28 = arith.constant 0 : index
      %c0_29 = arith.constant 0 : index
      %c0_30 = arith.constant 0 : index
      %41 = vector.load %arg9[%c0_28, %c0_29, %c0_30] : memref<2x8x8xf32, #tpu.memory_space<vmem>>, vector<2x8x8xf32>
      tpu.vector_store %arg9[%c0_28, %c0_29, %c0_30], %40 {strides = array<i32>} : memref<2x8x8xf32, #tpu.memory_space<vmem>>, vector<2x8x8xf32>,
      %c0_31 = arith.constant 0 : index
      %c0_32 = arith.constant 0 : index
      %c0_33 = arith.constant 0 : index
      %42 = vector.load %arg7[%c0_31, %c0_32, %c0_33] : memref<2x8x128xf32, #tpu.memory_space<vmem>>, vector<2x8x128xf32>
      tpu.vector_store %arg7[%c0_31, %c0_32, %c0_33], %19 {strides = array<i32>} : memref<2x8x128xf32, #tpu.memory_space<vmem>>, vector<2x8x128xf32>,
    } else {
    }
    %6 = arith.cmpi eq, %arg2, %arg1 : i32
    %7 = arith.extui %6 : i1 to i32
    %c0_i32_2 = arith.constant 0 : i32
    %8 = arith.cmpi ne, %7, %c0_i32_2 : i32
    scf.if %8 {
      %c0 = arith.constant 0 : index
      %c0_5 = arith.constant 0 : index
      %c0_6 = arith.constant 0 : index
      %12 = vector.load %arg3[%c0, %c0_5, %c0_6] : memref<2x8x8xbf16, #tpu.memory_space<vmem>>, vector<2x8x8xbf16>
      %c0_7 = arith.constant 0 : index
      %c0_8 = arith.constant 0 : index
      %c0_9 = arith.constant 0 : index
      %13 = vector.load %arg4[%c0_7, %c0_8, %c0_9] : memref<2x8x8xbf16, #tpu.memory_space<vmem>>, vector<2x8x8xbf16>
      "tpu.trace_start"() <{level = 10 : i32, message = "bqd,bkd->bqk"}> : () -> ()
      %cst = arith.constant dense<0.000000e+00> : vector<2x8x8xf32>
      %14 = tpu.matmul %12, %13, %cst {dimension_numbers = #tpu.dot_dimension_numbers<[2], [2], [1], [1], [0, 0, 0, 1, 1, 1], [0], [0]>} : vector<2x8x8xbf16>, vector<2x8x8xbf16>, vector<2x8x8xf32> -> vector<2x8x8xf32>
      "tpu.trace_stop"() : () -> ()
      %c8_i32 = arith.constant 8 : i32
      %15 = arith.muli %arg1, %c8_i32 : i32
      %16 = tpu.iota {dimensions = array<i32: 1>} : vector<2x8x8xi32>
      %17 = vector.broadcast %15 : i32 to vector<2x8x8xi32>
      %18 = arith.addi %17, %16 : vector<2x8x8xi32>
      %c8_i32_10 = arith.constant 8 : i32
      %19 = arith.muli %arg2, %c8_i32_10 : i32
      %20 = tpu.iota {dimensions = array<i32: 2>} : vector<2x8x8xi32>
      %21 = vector.broadcast %19 : i32 to vector<2x8x8xi32>
      %22 = arith.addi %21, %20 : vector<2x8x8xi32>
      %23 = arith.cmpi sge, %18, %22 : vector<2x8x8xi32>
      %cst_11 = arith.constant -1.000000e+30 : f32
      %24 = vector.broadcast %cst_11 : f32 to vector<2x8x8xf32>
      %25 = arith.select %23, %14, %24 : vector<2x8x8xi1>, vector<2x8x8xf32>
      %c0_12 = arith.constant 0 : index
      %c0_13 = arith.constant 0 : index
      %c0_14 = arith.constant 0 : index
      %26 = vector.load %arg7[%c0_12, %c0_13, %c0_14] : memref<2x8x128xf32, #tpu.memory_space<vmem>>, vector<2x8x128xf32>
      %cst_15 = arith.constant dense<0xFF800000> : vector<2x8xf32>
      %27 = vector.multi_reduction <maximumf>, %25, %cst_15 [2] : vector<2x8x8xf32> to vector<2x8xf32>
      %28 = vector.shape_cast %27 : vector<2x8xf32> to vector<2x8x1xf32>
      %29 = vector.broadcast %28 : vector<2x8x1xf32> to vector<2x8x128xf32>
      %30 = arith.maximumf %26, %29 : vector<2x8x128xf32>
      %31 = arith.subf %26, %30 : vector<2x8x128xf32>
      %32 = math.exp %31 : vector<2x8x128xf32>
      %33 = vector.extract_strided_slice %30 {offsets = [0, 0, 0], sizes = [2, 8, 1], strides = [1, 1, 1]} : vector<2x8x128xf32> to vector<2x8x1xf32>
      %34 = vector.broadcast %33 : vector<2x8x1xf32> to vector<2x8x8xf32>
      %35 = arith.subf %25, %34 : vector<2x8x8xf32>
      %36 = math.exp %35 : vector<2x8x8xf32>
      %c0_16 = arith.constant 0 : index
      %c0_17 = arith.constant 0 : index
      %c0_18 = arith.constant 0 : index
      %37 = vector.load %arg8[%c0_16, %c0_17, %c0_18] : memref<2x8x128xf32, #tpu.memory_space<vmem>>, vector<2x8x128xf32>
      %38 = arith.mulf %32, %37 : vector<2x8x128xf32>
      %cst_19 = arith.constant dense<0.000000e+00> : vector<2x8xf32>
      %39 = vector.multi_reduction <add>, %36, %cst_19 [2] : vector<2x8x8xf32> to vector<2x8xf32>
      %40 = vector.shape_cast %39 : vector<2x8xf32> to vector<2x8x1xf32>
      %41 = vector.broadcast %40 : vector<2x8x1xf32> to vector<2x8x128xf32>
      %42 = arith.addf %38, %41 : vector<2x8x128xf32>
      %c0_20 = arith.constant 0 : index
      %c0_21 = arith.constant 0 : index
      %c0_22 = arith.constant 0 : index
      %43 = vector.load %arg8[%c0_20, %c0_21, %c0_22] : memref<2x8x128xf32, #tpu.memory_space<vmem>>, vector<2x8x128xf32>
      tpu.vector_store %arg8[%c0_20, %c0_21, %c0_22], %42 {strides = array<i32>} : memref<2x8x128xf32, #tpu.memory_space<vmem>>, vector<2x8x128xf32>,
      %44 = vector.extract_strided_slice %32 {offsets = [0, 0, 0], sizes = [2, 8, 1], strides = [1, 1, 1]} : vector<2x8x128xf32> to vector<2x8x1xf32>
      %c0_23 = arith.constant 0 : index
      %c0_24 = arith.constant 0 : index
      %c0_25 = arith.constant 0 : index
      %45 = vector.load %arg9[%c0_23, %c0_24, %c0_25] : memref<2x8x8xf32, #tpu.memory_space<vmem>>, vector<2x8x8xf32>
      %46 = vector.broadcast %44 : vector<2x8x1xf32> to vector<2x8x8xf32>
      %47 = arith.mulf %46, %45 : vector<2x8x8xf32>
      %48 = arith.truncf %36 : vector<2x8x8xf32> to vector<2x8x8xbf16>
      %c0_26 = arith.constant 0 : index
      %c0_27 = arith.constant 0 : index
      %c0_28 = arith.constant 0 : index
      %49 = vector.load %arg5[%c0_26, %c0_27, %c0_28] : memref<2x8x8xbf16, #tpu.memory_space<vmem>>, vector<2x8x8xbf16>
      "tpu.trace_start"() <{level = 10 : i32, message = "bqk,bkd->bqd"}> : () -> ()
      %cst_29 = arith.constant dense<0.000000e+00> : vector<2x8x8xf32>
      %50 = tpu.matmul %48, %49, %cst_29 {dimension_numbers = #tpu.dot_dimension_numbers<[2], [1], [1], [2], [0, 0, 0, 1, 1, 2], [0], [0]>} : vector<2x8x8xbf16>, vector<2x8x8xbf16>, vector<2x8x8xf32> -> vector<2x8x8xf32>
      "tpu.trace_stop"() : () -> ()
      %51 = arith.addf %47, %50 : vector<2x8x8xf32>
      %c0_30 = arith.constant 0 : index
      %c0_31 = arith.constant 0 : index
      %c0_32 = arith.constant 0 : index
      %52 = vector.load %arg9[%c0_30, %c0_31, %c0_32] : memref<2x8x8xf32, #tpu.memory_space<vmem>>, vector<2x8x8xf32>
      tpu.vector_store %arg9[%c0_30, %c0_31, %c0_32], %51 {strides = array<i32>} : memref<2x8x8xf32, #tpu.memory_space<vmem>>, vector<2x8x8xf32>,
      %c0_33 = arith.constant 0 : index
      %c0_34 = arith.constant 0 : index
      %c0_35 = arith.constant 0 : index
      %53 = vector.load %arg7[%c0_33, %c0_34, %c0_35] : memref<2x8x128xf32, #tpu.memory_space<vmem>>, vector<2x8x128xf32>
      tpu.vector_store %arg7[%c0_33, %c0_34, %c0_35], %30 {strides = array<i32>} : memref<2x8x128xf32, #tpu.memory_space<vmem>>, vector<2x8x128xf32>,
    } else {
    }
    %c0_i32_3 = arith.constant 0 : i32
    %9 = arith.cmpi eq, %arg2, %c0_i32_3 : i32
    %10 = arith.extui %9 : i1 to i32
    %c0_i32_4 = arith.constant 0 : i32
    %11 = arith.cmpi ne, %10, %c0_i32_4 : i32
    scf.if %11 {
      %c0 = arith.constant 0 : index
      %c0_5 = arith.constant 0 : index
      %c0_6 = arith.constant 0 : index
      %12 = vector.load %arg8[%c0, %c0_5, %c0_6] : memref<2x8x128xf32, #tpu.memory_space<vmem>>, vector<2x8x128xf32>
      %13 = vector.extract_strided_slice %12 {offsets = [0, 0, 0], sizes = [2, 8, 1], strides = [1, 1, 1]} : vector<2x8x128xf32> to vector<2x8x1xf32>
      %14 = tpu.reciprocal %13 {approx = true} : vector<2x8x1xf32> -> vector<2x8x1xf32>
      %c0_7 = arith.constant 0 : index
      %c0_8 = arith.constant 0 : index
      %c0_9 = arith.constant 0 : index
      %15 = vector.load %arg9[%c0_7, %c0_8, %c0_9] : memref<2x8x8xf32, #tpu.memory_space<vmem>>, vector<2x8x8xf32>
      %16 = vector.broadcast %14 : vector<2x8x1xf32> to vector<2x8x8xf32>
      %17 = arith.mulf %15, %16 : vector<2x8x8xf32>
      %18 = arith.truncf %17 : vector<2x8x8xf32> to vector<2x8x8xbf16>
      %c0_10 = arith.constant 0 : index
      %c0_11 = arith.constant 0 : index
      %c0_12 = arith.constant 0 : index
      %19 = vector.load %arg6[%c0_10, %c0_11, %c0_12] : memref<2x8x8xbf16, #tpu.memory_space<vmem>>, vector<2x8x8xbf16>
      tpu.vector_store %arg6[%c0_10, %c0_11, %c0_12], %18 {strides = array<i32>} : memref<2x8x8xbf16, #tpu.memory_space<vmem>>, vector<2x8x8xbf16>,
    } else {
    }
    return
  }
  func.func @transform_0(%arg0: i32, %arg1: i32, %arg2: i32) -> (i32, i32, i32) {
    %c0_i32 = arith.constant 0 : i32
    %c0_i32_0 = arith.constant 0 : i32
    return %arg0, %arg1, %c0_i32 : i32, i32, i32
  }
  func.func @transform_1(%arg0: i32, %arg1: i32, %arg2: i32) -> (i32, i32, i32) {
    %0 = arith.minsi %arg2, %arg1 : i32
    %c0_i32 = arith.constant 0 : i32
    %c0_i32_0 = arith.constant 0 : i32
    return %arg0, %0, %c0_i32 : i32, i32, i32
  }
  func.func @transform_2(%arg0: i32, %arg1: i32, %arg2: i32) -> (i32, i32, i32) {
    %0 = arith.minsi %arg2, %arg1 : i32
    %c0_i32 = arith.constant 0 : i32
    %c0_i32_0 = arith.constant 0 : i32
    return %arg0, %0, %c0_i32 : i32, i32, i32
  }
  func.func @transform_3(%arg0: i32, %arg1: i32, %arg2: i32) -> (i32, i32, i32) {
    %c0_i32 = arith.constant 0 : i32
    %c0_i32_0 = arith.constant 0 : i32
    return %arg0, %arg1, %c0_i32 : i32, i32, i32
  }
}

module attributes {stable_mosaic.version = 11 : i64} {
  func.func @_ln_linear_kernel(%arg0: i32, %arg1: i32, %arg2: memref<16x32xbf16, #tpu.memory_space<vmem>>, %arg3: memref<1x32xf32, #tpu.memory_space<vmem>>, %arg4: memref<1x32xf32, #tpu.memory_space<vmem>>, %arg5: memref<32x128xbf16, #tpu.memory_space<vmem>>, %arg6: memref<1x128xf32, #tpu.memory_space<vmem>>, %arg7: memref<16x128xbf16, #tpu.memory_space<vmem>>, %arg8: memref<16x32xbf16, #tpu.memory_space<vmem>>) attributes {dimension_semantics = [#tpu.dimension_semantics<parallel>, #tpu.dimension_semantics<arbitrary>], iteration_bounds = array<i64: 1, 1>, scalar_prefetch = 0 : i64, scratch_operands = 1 : i64, tpu.core_type = #tpu.core_type<tc>, window_params = [{transform_indices = @transform_0, window_bounds = array<i64: 16, 32>}, {pipeline_mode = #tpu.pipeline_mode<synchronous>, transform_indices = @transform_1, window_bounds = array<i64: 1, 32>}, {pipeline_mode = #tpu.pipeline_mode<synchronous>, transform_indices = @transform_2, window_bounds = array<i64: 1, 32>}, {transform_indices = @transform_3, window_bounds = array<i64: 32, 128>}, {transform_indices = @transform_4, window_bounds = array<i64: 1, 128>}, {transform_indices = @transform_5, window_bounds = array<i64: 16, 128>}]} {
    %c0_i32 = arith.constant 0 : i32
    %0 = arith.cmpi eq, %arg1, %c0_i32 : i32
    %1 = arith.extui %0 : i1 to i32
    %c0_i32_0 = arith.constant 0 : i32
    %2 = arith.cmpi ne, %1, %c0_i32_0 : i32
    scf.if %2 {
      %c0_12 = arith.constant 0 : index
      %c0_13 = arith.constant 0 : index
      %24 = vector.load %arg2[%c0_12, %c0_13] : memref<16x32xbf16, #tpu.memory_space<vmem>>, vector<16x32xbf16>
      %25 = arith.extf %24 : vector<16x32xbf16> to vector<16x32xf32>
      %cst_14 = arith.constant dense<0.000000e+00> : vector<16xf32>
      %26 = vector.multi_reduction <add>, %25, %cst_14 [1] : vector<16x32xf32> to vector<16xf32>
      %27 = vector.shape_cast %26 : vector<16xf32> to vector<16x1xf32>
      %cst_15 = arith.constant 3.200000e+01 : f32
      %28 = vector.broadcast %cst_15 : f32 to vector<16x1xf32>
      %29 = arith.divf %27, %28 : vector<16x1xf32>
      %30 = vector.broadcast %29 : vector<16x1xf32> to vector<16x32xf32>
      %31 = arith.subf %25, %30 : vector<16x32xf32>
      %32 = arith.mulf %31, %31 : vector<16x32xf32>
      %cst_16 = arith.constant dense<0.000000e+00> : vector<16xf32>
      %33 = vector.multi_reduction <add>, %32, %cst_16 [1] : vector<16x32xf32> to vector<16xf32>
      %34 = vector.shape_cast %33 : vector<16xf32> to vector<16x1xf32>
      %cst_17 = arith.constant 3.200000e+01 : f32
      %35 = vector.broadcast %cst_17 : f32 to vector<16x1xf32>
      %36 = arith.divf %34, %35 : vector<16x1xf32>
      %37 = vector.broadcast %29 : vector<16x1xf32> to vector<16x32xf32>
      %38 = arith.subf %25, %37 : vector<16x32xf32>
      %cst_18 = arith.constant 9.99999974E-6 : f32
      %39 = vector.broadcast %cst_18 : f32 to vector<16x1xf32>
      %40 = arith.addf %36, %39 : vector<16x1xf32>
      %41 = math.rsqrt %40 : vector<16x1xf32>
      %42 = vector.broadcast %41 : vector<16x1xf32> to vector<16x32xf32>
      %43 = arith.mulf %38, %42 : vector<16x32xf32>
      %c0_19 = arith.constant 0 : index
      %c0_20 = arith.constant 0 : index
      %44 = vector.load %arg3[%c0_19, %c0_20] : memref<1x32xf32, #tpu.memory_space<vmem>>, vector<1x32xf32>
      %45 = vector.broadcast %44 : vector<1x32xf32> to vector<16x32xf32>
      %46 = arith.mulf %43, %45 : vector<16x32xf32>
      %c0_21 = arith.constant 0 : index
      %c0_22 = arith.constant 0 : index
      %47 = vector.load %arg4[%c0_21, %c0_22] : memref<1x32xf32, #tpu.memory_space<vmem>>, vector<1x32xf32>
      %48 = vector.broadcast %47 : vector<1x32xf32> to vector<16x32xf32>
      %49 = arith.addf %46, %48 : vector<16x32xf32>
      %50 = arith.truncf %49 : vector<16x32xf32> to vector<16x32xbf16>
      %c0_23 = arith.constant 0 : index
      %c0_24 = arith.constant 0 : index
      %51 = vector.load %arg8[%c0_23, %c0_24] : memref<16x32xbf16, #tpu.memory_space<vmem>>, vector<16x32xbf16>
      tpu.vector_store %arg8[%c0_23, %c0_24], %50 {strides = array<i32>} : memref<16x32xbf16, #tpu.memory_space<vmem>>, vector<16x32xbf16>,
    } else {
    }
    %c0 = arith.constant 0 : index
    %c0_1 = arith.constant 0 : index
    %3 = vector.load %arg8[%c0, %c0_1] : memref<16x32xbf16, #tpu.memory_space<vmem>>, vector<16x32xbf16>
    %c0_2 = arith.constant 0 : index
    %c0_3 = arith.constant 0 : index
    %4 = vector.load %arg5[%c0_2, %c0_3] : memref<32x128xbf16, #tpu.memory_space<vmem>>, vector<32x128xbf16>
    %cst = arith.constant dense<0.000000e+00> : vector<16x128xf32>
    %5 = tpu.matmul %3, %4, %cst {dimension_numbers = #tpu.dot_dimension_numbers<[1], [0], [0], [1], [0, 0, 1, 1], [], []>} : vector<16x32xbf16>, vector<32x128xbf16>, vector<16x128xf32> -> vector<16x128xf32>
    %c0_4 = arith.constant 0 : index
    %c0_5 = arith.constant 0 : index
    %6 = vector.load %arg6[%c0_4, %c0_5] : memref<1x128xf32, #tpu.memory_space<vmem>>, vector<1x128xf32>
    %7 = vector.broadcast %6 : vector<1x128xf32> to vector<16x128xf32>
    %8 = arith.addf %5, %7 : vector<16x128xf32>
    %9 = arith.mulf %8, %8 : vector<16x128xf32>
    %10 = arith.mulf %8, %9 : vector<16x128xf32>
    %cst_6 = arith.constant 4.471500e-02 : f32
    %11 = vector.broadcast %cst_6 : f32 to vector<16x128xf32>
    %12 = arith.mulf %11, %10 : vector<16x128xf32>
    %13 = arith.addf %8, %12 : vector<16x128xf32>
    %cst_7 = arith.constant 0.797884583 : f32
    %14 = vector.broadcast %cst_7 : f32 to vector<16x128xf32>
    %15 = arith.mulf %14, %13 : vector<16x128xf32>
    %16 = math.tanh %15 : vector<16x128xf32>
    %cst_8 = arith.constant 1.000000e+00 : f32
    %17 = vector.broadcast %cst_8 : f32 to vector<16x128xf32>
    %18 = arith.addf %17, %16 : vector<16x128xf32>
    %cst_9 = arith.constant 5.000000e-01 : f32
    %19 = vector.broadcast %cst_9 : f32 to vector<16x128xf32>
    %20 = arith.mulf %19, %18 : vector<16x128xf32>
    %21 = arith.mulf %8, %20 : vector<16x128xf32>
    %22 = arith.truncf %21 : vector<16x128xf32> to vector<16x128xbf16>
    %c0_10 = arith.constant 0 : index
    %c0_11 = arith.constant 0 : index
    %23 = vector.load %arg7[%c0_10, %c0_11] : memref<16x128xbf16, #tpu.memory_space<vmem>>, vector<16x128xbf16>
    tpu.vector_store %arg7[%c0_10, %c0_11], %22 {strides = array<i32>} : memref<16x128xbf16, #tpu.memory_space<vmem>>, vector<16x128xbf16>,
    return
  }
  func.func @transform_0(%arg0: i32, %arg1: i32) -> (i32, i32) {
    %c0_i32 = arith.constant 0 : i32
    %c0_i32_0 = arith.constant 0 : i32
    return %arg0, %c0_i32 : i32, i32
  }
  func.func @transform_1(%arg0: i32, %arg1: i32) -> (i32, i32) {
    %c0_i32 = arith.constant 0 : i32
    %c0_i32_0 = arith.constant 0 : i32
    %c0_i32_1 = arith.constant 0 : i32
    return %c0_i32, %c0_i32_0 : i32, i32
  }
  func.func @transform_2(%arg0: i32, %arg1: i32) -> (i32, i32) {
    %c0_i32 = arith.constant 0 : i32
    %c0_i32_0 = arith.constant 0 : i32
    %c0_i32_1 = arith.constant 0 : i32
    return %c0_i32, %c0_i32_0 : i32, i32
  }
  func.func @transform_3(%arg0: i32, %arg1: i32) -> (i32, i32) {
    %c0_i32 = arith.constant 0 : i32
    %c0_i32_0 = arith.constant 0 : i32
    return %c0_i32, %arg1 : i32, i32
  }
  func.func @transform_4(%arg0: i32, %arg1: i32) -> (i32, i32) {
    %c0_i32 = arith.constant 0 : i32
    %c0_i32_0 = arith.constant 0 : i32
    return %c0_i32, %arg1 : i32, i32
  }
  func.func @transform_5(%arg0: i32, %arg1: i32) -> (i32, i32) {
    %c0_i32 = arith.constant 0 : i32
    return %arg0, %arg1 : i32, i32
  }
}

module attributes {stable_mosaic.version = 11 : i64} {
  func.func @_linear_residual_kernel(%arg0: i32, %arg1: i32, %arg2: i32, %arg3: memref<16x32xbf16, #tpu.memory_space<vmem>>, %arg4: memref<32x32xbf16, #tpu.memory_space<vmem>>, %arg5: memref<1x32xf32, #tpu.memory_space<vmem>>, %arg6: memref<16x32xbf16, #tpu.memory_space<vmem>>, %arg7: memref<16x32xbf16, #tpu.memory_space<vmem>>, %arg8: memref<16x32xf32, #tpu.memory_space<vmem>>) attributes {dimension_semantics = [#tpu.dimension_semantics<parallel>, #tpu.dimension_semantics<parallel>, #tpu.dimension_semantics<arbitrary>], iteration_bounds = array<i64: 1, 1, 1>, scalar_prefetch = 0 : i64, scratch_operands = 1 : i64, tpu.core_type = #tpu.core_type<tc>, window_params = [{transform_indices = @transform_0, window_bounds = array<i64: 16, 32>}, {transform_indices = @transform_1, window_bounds = array<i64: 32, 32>}, {transform_indices = @transform_2, window_bounds = array<i64: 1, 32>}, {transform_indices = @transform_3, window_bounds = array<i64: 16, 32>}, {transform_indices = @transform_4, window_bounds = array<i64: 16, 32>}]} {
    %c0_i32 = arith.constant 0 : i32
    %0 = arith.cmpi eq, %arg2, %c0_i32 : i32
    %1 = arith.extui %0 : i1 to i32
    %c0_i32_0 = arith.constant 0 : i32
    %2 = arith.cmpi ne, %1, %c0_i32_0 : i32
    scf.if %2 {
      %c0_10 = arith.constant 0 : index
      %c0_11 = arith.constant 0 : index
      %12 = vector.load %arg6[%c0_10, %c0_11] : memref<16x32xbf16, #tpu.memory_space<vmem>>, vector<16x32xbf16>
      %13 = arith.extf %12 : vector<16x32xbf16> to vector<16x32xf32>
      %c0_12 = arith.constant 0 : index
      %c0_13 = arith.constant 0 : index
      %14 = vector.load %arg5[%c0_12, %c0_13] : memref<1x32xf32, #tpu.memory_space<vmem>>, vector<1x32xf32>
      %15 = vector.broadcast %14 : vector<1x32xf32> to vector<16x32xf32>
      %16 = arith.addf %13, %15 : vector<16x32xf32>
      %c0_14 = arith.constant 0 : index
      %c0_15 = arith.constant 0 : index
      %17 = vector.load %arg8[%c0_14, %c0_15] : memref<16x32xf32, #tpu.memory_space<vmem>>, vector<16x32xf32>
      tpu.vector_store %arg8[%c0_14, %c0_15], %16 {strides = array<i32>} : memref<16x32xf32, #tpu.memory_space<vmem>>, vector<16x32xf32>,
    } else {
    }
    %c0 = arith.constant 0 : index
    %c0_1 = arith.constant 0 : index
    %3 = vector.load %arg8[%c0, %c0_1] : memref<16x32xf32, #tpu.memory_space<vmem>>, vector<16x32xf32>
    %c0_2 = arith.constant 0 : index
    %c0_3 = arith.constant 0 : index
    %4 = vector.load %arg3[%c0_2, %c0_3] : memref<16x32xbf16, #tpu.memory_space<vmem>>, vector<16x32xbf16>
    %c0_4 = arith.constant 0 : index
    %c0_5 = arith.constant 0 : index
    %5 = vector.load %arg4[%c0_4, %c0_5] : memref<32x32xbf16, #tpu.memory_space<vmem>>, vector<32x32xbf16>
    %cst = arith.constant dense<0.000000e+00> : vector<16x32xf32>
    %6 = tpu.matmul %4, %5, %cst {dimension_numbers = #tpu.dot_dimension_numbers<[1], [0], [0], [1], [0, 0, 1, 1], [], []>} : vector<16x32xbf16>, vector<32x32xbf16>, vector<16x32xf32> -> vector<16x32xf32>
    %7 = arith.addf %3, %6 : vector<16x32xf32>
    %c0_6 = arith.constant 0 : index
    %c0_7 = arith.constant 0 : index
    %8 = vector.load %arg8[%c0_6, %c0_7] : memref<16x32xf32, #tpu.memory_space<vmem>>, vector<16x32xf32>
    tpu.vector_store %arg8[%c0_6, %c0_7], %7 {strides = array<i32>} : memref<16x32xf32, #tpu.memory_space<vmem>>, vector<16x32xf32>,
    %c0_i32_8 = arith.constant 0 : i32
    %9 = arith.cmpi eq, %arg2, %c0_i32_8 : i32
    %10 = arith.extui %9 : i1 to i32
    %c0_i32_9 = arith.constant 0 : i32
    %11 = arith.cmpi ne, %10, %c0_i32_9 : i32
    scf.if %11 {
      %c0_10 = arith.constant 0 : index
      %c0_11 = arith.constant 0 : index
      %12 = vector.load %arg8[%c0_10, %c0_11] : memref<16x32xf32, #tpu.memory_space<vmem>>, vector<16x32xf32>
      %13 = arith.truncf %12 : vector<16x32xf32> to vector<16x32xbf16>
      %c0_12 = arith.constant 0 : index
      %c0_13 = arith.constant 0 : index
      %14 = vector.load %arg7[%c0_12, %c0_13] : memref<16x32xbf16, #tpu.memory_space<vmem>>, vector<16x32xbf16>
      tpu.vector_store %arg7[%c0_12, %c0_13], %13 {strides = array<i32>} : memref<16x32xbf16, #tpu.memory_space<vmem>>, vector<16x32xbf16>,
    } else {
    }
    return
  }
  func.func @transform_0(%arg0: i32, %arg1: i32, %arg2: i32) -> (i32, i32) {
    %c0_i32 = arith.constant 0 : i32
    return %arg0, %arg2 : i32, i32
  }
  func.func @transform_1(%arg0: i32, %arg1: i32, %arg2: i32) -> (i32, i32) {
    %c0_i32 = arith.constant 0 : i32
    return %arg2, %arg1 : i32, i32
  }
  func.func @transform_2(%arg0: i32, %arg1: i32, %arg2: i32) -> (i32, i32) {
    %c0_i32 = arith.constant 0 : i32
    %c0_i32_0 = arith.constant 0 : i32
    return %c0_i32, %arg1 : i32, i32
  }
  func.func @transform_3(%arg0: i32, %arg1: i32, %arg2: i32) -> (i32, i32) {
    %c0_i32 = arith.constant 0 : i32
    return %arg0, %arg1 : i32, i32
  }
  func.func @transform_4(%arg0: i32, %arg1: i32, %arg2: i32) -> (i32, i32) {
    %c0_i32 = arith.constant 0 : i32
    return %arg0, %arg1 : i32, i32
  }
}

module attributes {stable_mosaic.version = 11 : i64} {
  func.func @_linear_residual_kernel(%arg0: i32, %arg1: i32, %arg2: i32, %arg3: memref<16x128xbf16, #tpu.memory_space<vmem>>, %arg4: memref<128x32xbf16, #tpu.memory_space<vmem>>, %arg5: memref<1x32xf32, #tpu.memory_space<vmem>>, %arg6: memref<16x32xbf16, #tpu.memory_space<vmem>>, %arg7: memref<16x32xbf16, #tpu.memory_space<vmem>>, %arg8: memref<16x32xf32, #tpu.memory_space<vmem>>) attributes {dimension_semantics = [#tpu.dimension_semantics<parallel>, #tpu.dimension_semantics<parallel>, #tpu.dimension_semantics<arbitrary>], iteration_bounds = array<i64: 1, 1, 1>, scalar_prefetch = 0 : i64, scratch_operands = 1 : i64, tpu.core_type = #tpu.core_type<tc>, window_params = [{transform_indices = @transform_0, window_bounds = array<i64: 16, 128>}, {transform_indices = @transform_1, window_bounds = array<i64: 128, 32>}, {transform_indices = @transform_2, window_bounds = array<i64: 1, 32>}, {transform_indices = @transform_3, window_bounds = array<i64: 16, 32>}, {transform_indices = @transform_4, window_bounds = array<i64: 16, 32>}]} {
    %c0_i32 = arith.constant 0 : i32
    %0 = arith.cmpi eq, %arg2, %c0_i32 : i32
    %1 = arith.extui %0 : i1 to i32
    %c0_i32_0 = arith.constant 0 : i32
    %2 = arith.cmpi ne, %1, %c0_i32_0 : i32
    scf.if %2 {
      %c0_10 = arith.constant 0 : index
      %c0_11 = arith.constant 0 : index
      %12 = vector.load %arg6[%c0_10, %c0_11] : memref<16x32xbf16, #tpu.memory_space<vmem>>, vector<16x32xbf16>
      %13 = arith.extf %12 : vector<16x32xbf16> to vector<16x32xf32>
      %c0_12 = arith.constant 0 : index
      %c0_13 = arith.constant 0 : index
      %14 = vector.load %arg5[%c0_12, %c0_13] : memref<1x32xf32, #tpu.memory_space<vmem>>, vector<1x32xf32>
      %15 = vector.broadcast %14 : vector<1x32xf32> to vector<16x32xf32>
      %16 = arith.addf %13, %15 : vector<16x32xf32>
      %c0_14 = arith.constant 0 : index
      %c0_15 = arith.constant 0 : index
      %17 = vector.load %arg8[%c0_14, %c0_15] : memref<16x32xf32, #tpu.memory_space<vmem>>, vector<16x32xf32>
      tpu.vector_store %arg8[%c0_14, %c0_15], %16 {strides = array<i32>} : memref<16x32xf32, #tpu.memory_space<vmem>>, vector<16x32xf32>,
    } else {
    }
    %c0 = arith.constant 0 : index
    %c0_1 = arith.constant 0 : index
    %3 = vector.load %arg8[%c0, %c0_1] : memref<16x32xf32, #tpu.memory_space<vmem>>, vector<16x32xf32>
    %c0_2 = arith.constant 0 : index
    %c0_3 = arith.constant 0 : index
    %4 = vector.load %arg3[%c0_2, %c0_3] : memref<16x128xbf16, #tpu.memory_space<vmem>>, vector<16x128xbf16>
    %c0_4 = arith.constant 0 : index
    %c0_5 = arith.constant 0 : index
    %5 = vector.load %arg4[%c0_4, %c0_5] : memref<128x32xbf16, #tpu.memory_space<vmem>>, vector<128x32xbf16>
    %cst = arith.constant dense<0.000000e+00> : vector<16x32xf32>
    %6 = tpu.matmul %4, %5, %cst {dimension_numbers = #tpu.dot_dimension_numbers<[1], [0], [0], [1], [0, 0, 1, 1], [], []>} : vector<16x128xbf16>, vector<128x32xbf16>, vector<16x32xf32> -> vector<16x32xf32>
    %7 = arith.addf %3, %6 : vector<16x32xf32>
    %c0_6 = arith.constant 0 : index
    %c0_7 = arith.constant 0 : index
    %8 = vector.load %arg8[%c0_6, %c0_7] : memref<16x32xf32, #tpu.memory_space<vmem>>, vector<16x32xf32>
    tpu.vector_store %arg8[%c0_6, %c0_7], %7 {strides = array<i32>} : memref<16x32xf32, #tpu.memory_space<vmem>>, vector<16x32xf32>,
    %c0_i32_8 = arith.constant 0 : i32
    %9 = arith.cmpi eq, %arg2, %c0_i32_8 : i32
    %10 = arith.extui %9 : i1 to i32
    %c0_i32_9 = arith.constant 0 : i32
    %11 = arith.cmpi ne, %10, %c0_i32_9 : i32
    scf.if %11 {
      %c0_10 = arith.constant 0 : index
      %c0_11 = arith.constant 0 : index
      %12 = vector.load %arg8[%c0_10, %c0_11] : memref<16x32xf32, #tpu.memory_space<vmem>>, vector<16x32xf32>
      %13 = arith.truncf %12 : vector<16x32xf32> to vector<16x32xbf16>
      %c0_12 = arith.constant 0 : index
      %c0_13 = arith.constant 0 : index
      %14 = vector.load %arg7[%c0_12, %c0_13] : memref<16x32xbf16, #tpu.memory_space<vmem>>, vector<16x32xbf16>
      tpu.vector_store %arg7[%c0_12, %c0_13], %13 {strides = array<i32>} : memref<16x32xbf16, #tpu.memory_space<vmem>>, vector<16x32xbf16>,
    } else {
    }
    return
  }
  func.func @transform_0(%arg0: i32, %arg1: i32, %arg2: i32) -> (i32, i32) {
    %c0_i32 = arith.constant 0 : i32
    return %arg0, %arg2 : i32, i32
  }
  func.func @transform_1(%arg0: i32, %arg1: i32, %arg2: i32) -> (i32, i32) {
    %c0_i32 = arith.constant 0 : i32
    return %arg2, %arg1 : i32, i32
  }
  func.func @transform_2(%arg0: i32, %arg1: i32, %arg2: i32) -> (i32, i32) {
    %c0_i32 = arith.constant 0 : i32
    %c0_i32_0 = arith.constant 0 : i32
    return %c0_i32, %arg1 : i32, i32
  }
  func.func @transform_3(%arg0: i32, %arg1: i32, %arg2: i32) -> (i32, i32) {
    %c0_i32 = arith.constant 0 : i32
    return %arg0, %arg1 : i32, i32
  }
  func.func @transform_4(%arg0: i32, %arg1: i32, %arg2: i32) -> (i32, i32) {
    %c0_i32 = arith.constant 0 : i32
    return %arg0, %arg1 : i32, i32
  }
}

module attributes {stable_mosaic.version = 11 : i64} {
  func.func @_layernorm_kernel(%arg0: i32, %arg1: memref<16x32xbf16, #tpu.memory_space<vmem>>, %arg2: memref<1x32xf32, #tpu.memory_space<vmem>>, %arg3: memref<1x32xf32, #tpu.memory_space<vmem>>, %arg4: memref<16x32xbf16, #tpu.memory_space<vmem>>) attributes {dimension_semantics = [#tpu.dimension_semantics<parallel>], iteration_bounds = array<i64: 1>, scalar_prefetch = 0 : i64, scratch_operands = 0 : i64, tpu.core_type = #tpu.core_type<tc>, window_params = [{transform_indices = @transform_0, window_bounds = array<i64: 16, 32>}, {pipeline_mode = #tpu.pipeline_mode<synchronous>, transform_indices = @transform_1, window_bounds = array<i64: 1, 32>}, {pipeline_mode = #tpu.pipeline_mode<synchronous>, transform_indices = @transform_2, window_bounds = array<i64: 1, 32>}, {transform_indices = @transform_3, window_bounds = array<i64: 16, 32>}]} {
    %c0 = arith.constant 0 : index
    %c0_0 = arith.constant 0 : index
    %0 = vector.load %arg1[%c0, %c0_0] : memref<16x32xbf16, #tpu.memory_space<vmem>>, vector<16x32xbf16>
    %1 = arith.extf %0 : vector<16x32xbf16> to vector<16x32xf32>
    %cst = arith.constant dense<0.000000e+00> : vector<16xf32>
    %2 = vector.multi_reduction <add>, %1, %cst [1] : vector<16x32xf32> to vector<16xf32>
    %3 = vector.shape_cast %2 : vector<16xf32> to vector<16x1xf32>
    %cst_1 = arith.constant 3.200000e+01 : f32
    %4 = vector.broadcast %cst_1 : f32 to vector<16x1xf32>
    %5 = arith.divf %3, %4 : vector<16x1xf32>
    %6 = vector.broadcast %5 : vector<16x1xf32> to vector<16x32xf32>
    %7 = arith.subf %1, %6 : vector<16x32xf32>
    %8 = arith.mulf %7, %7 : vector<16x32xf32>
    %cst_2 = arith.constant dense<0.000000e+00> : vector<16xf32>
    %9 = vector.multi_reduction <add>, %8, %cst_2 [1] : vector<16x32xf32> to vector<16xf32>
    %10 = vector.shape_cast %9 : vector<16xf32> to vector<16x1xf32>
    %cst_3 = arith.constant 3.200000e+01 : f32
    %11 = vector.broadcast %cst_3 : f32 to vector<16x1xf32>
    %12 = arith.divf %10, %11 : vector<16x1xf32>
    %13 = vector.broadcast %5 : vector<16x1xf32> to vector<16x32xf32>
    %14 = arith.subf %1, %13 : vector<16x32xf32>
    %cst_4 = arith.constant 9.99999974E-6 : f32
    %15 = vector.broadcast %cst_4 : f32 to vector<16x1xf32>
    %16 = arith.addf %12, %15 : vector<16x1xf32>
    %17 = math.rsqrt %16 : vector<16x1xf32>
    %18 = vector.broadcast %17 : vector<16x1xf32> to vector<16x32xf32>
    %19 = arith.mulf %14, %18 : vector<16x32xf32>
    %c0_5 = arith.constant 0 : index
    %c0_6 = arith.constant 0 : index
    %20 = vector.load %arg2[%c0_5, %c0_6] : memref<1x32xf32, #tpu.memory_space<vmem>>, vector<1x32xf32>
    %21 = vector.broadcast %20 : vector<1x32xf32> to vector<16x32xf32>
    %22 = arith.mulf %19, %21 : vector<16x32xf32>
    %c0_7 = arith.constant 0 : index
    %c0_8 = arith.constant 0 : index
    %23 = vector.load %arg3[%c0_7, %c0_8] : memref<1x32xf32, #tpu.memory_space<vmem>>, vector<1x32xf32>
    %24 = vector.broadcast %23 : vector<1x32xf32> to vector<16x32xf32>
    %25 = arith.addf %22, %24 : vector<16x32xf32>
    %26 = arith.truncf %25 : vector<16x32xf32> to vector<16x32xbf16>
    %c0_9 = arith.constant 0 : index
    %c0_10 = arith.constant 0 : index
    %27 = vector.load %arg4[%c0_9, %c0_10] : memref<16x32xbf16, #tpu.memory_space<vmem>>, vector<16x32xbf16>
    tpu.vector_store %arg4[%c0_9, %c0_10], %26 {strides = array<i32>} : memref<16x32xbf16, #tpu.memory_space<vmem>>, vector<16x32xbf16>,
    return
  }
  func.func @transform_0(%arg0: i32) -> (i32, i32) {
    %c0_i32 = arith.constant 0 : i32
    %c0_i32_0 = arith.constant 0 : i32
    return %arg0, %c0_i32 : i32, i32
  }
  func.func @transform_1(%arg0: i32) -> (i32, i32) {
    %c0_i32 = arith.constant 0 : i32
    %c0_i32_0 = arith.constant 0 : i32
    %c0_i32_1 = arith.constant 0 : i32
    return %c0_i32, %c0_i32_0 : i32, i32
  }
  func.func @transform_2(%arg0: i32) -> (i32, i32) {
    %c0_i32 = arith.constant 0 : i32
    %c0_i32_0 = arith.constant 0 : i32
    %c0_i32_1 = arith.constant 0 : i32
    return %c0_i32, %c0_i32_0 : i32, i32
  }
  func.func @transform_3(%arg0: i32) -> (i32, i32) {
    %c0_i32 = arith.constant 0 : i32
    %c0_i32_0 = arith.constant 0 : i32
    return %arg0, %c0_i32 : i32, i32
  }
}

module attributes {stable_mosaic.version = 11 : i64} {
  func.func @_logits_kernel(%arg0: i32, %arg1: i32, %arg2: memref<16x32xbf16, #tpu.memory_space<vmem>>, %arg3: memref<32x64xbf16, #tpu.memory_space<vmem>>, %arg4: memref<16x64xf32, #tpu.memory_space<vmem>>) attributes {dimension_semantics = [#tpu.dimension_semantics<parallel>, #tpu.dimension_semantics<parallel>], iteration_bounds = array<i64: 1, 1>, scalar_prefetch = 0 : i64, scratch_operands = 0 : i64, tpu.core_type = #tpu.core_type<tc>, window_params = [{transform_indices = @transform_0, window_bounds = array<i64: 16, 32>}, {transform_indices = @transform_1, window_bounds = array<i64: 32, 64>}, {transform_indices = @transform_2, window_bounds = array<i64: 16, 64>}]} {
    %c0 = arith.constant 0 : index
    %c0_0 = arith.constant 0 : index
    %0 = vector.load %arg2[%c0, %c0_0] : memref<16x32xbf16, #tpu.memory_space<vmem>>, vector<16x32xbf16>
    %c0_1 = arith.constant 0 : index
    %c0_2 = arith.constant 0 : index
    %1 = vector.load %arg3[%c0_1, %c0_2] : memref<32x64xbf16, #tpu.memory_space<vmem>>, vector<32x64xbf16>
    %cst = arith.constant dense<0.000000e+00> : vector<16x64xf32>
    %2 = tpu.matmul %0, %1, %cst {dimension_numbers = #tpu.dot_dimension_numbers<[1], [0], [0], [1], [0, 0, 1, 1], [], []>} : vector<16x32xbf16>, vector<32x64xbf16>, vector<16x64xf32> -> vector<16x64xf32>
    %c0_3 = arith.constant 0 : index
    %c0_4 = arith.constant 0 : index
    %3 = vector.load %arg4[%c0_3, %c0_4] : memref<16x64xf32, #tpu.memory_space<vmem>>, vector<16x64xf32>
    tpu.vector_store %arg4[%c0_3, %c0_4], %2 {strides = array<i32>} : memref<16x64xf32, #tpu.memory_space<vmem>>, vector<16x64xf32>,
    return
  }
  func.func @transform_0(%arg0: i32, %arg1: i32) -> (i32, i32) {
    %c0_i32 = arith.constant 0 : i32
    %c0_i32_0 = arith.constant 0 : i32
    return %arg0, %c0_i32 : i32, i32
  }
  func.func @transform_1(%arg0: i32, %arg1: i32) -> (i32, i32) {
    %c0_i32 = arith.constant 0 : i32
    %c0_i32_0 = arith.constant 0 : i32
    return %c0_i32, %arg1 : i32, i32
  }
  func.func @transform_2(%arg0: i32, %arg1: i32) -> (i32, i32) {
    %c0_i32 = arith.constant 0 : i32
    return %arg0, %arg1 : i32, i32
  }
}

</mosaic_0001>

<llo_original>
// kernel: decode.12
$region0: #{decode.12}
  #allocation0 [shape = 'u32[]', space=smem, size = 0x4, offset = 0x4, fixed_abs, tag = 'smem constant byte address 0x4 - core index']
  #allocation1 [shape = 'u32[144,128]{1,0:T(1,128)}', space=vmem, size = 0x12000, scoped, tag = 'internal scratch']
  #allocation2 [shape = 'bf16[16,32]{1,0:T(8,128)(2,1)}', space=vmem, size = 0x1000, scoped, tag = 'scratch operand']
  %s0 = inlined_call_operand.vmem [shape: bf16[16,32], index: 0, kind: input, shape index: {}]
  %s1 = inlined_call_operand.vmem [shape: f32[1,32], index: 1, kind: input, shape index: {}]
  %s2 = inlined_call_operand.vmem [shape: f32[1,32], index: 2, kind: input, shape index: {}]
  %s3 = inlined_call_operand.vmem [shape: bf16[32,96], index: 3, kind: input, shape index: {}]
  %s4 = inlined_call_operand.vmem [shape: f32[1,96], index: 4, kind: input, shape index: {}]
  %s5 = inlined_call_operand.vmem [shape: bf16[16,96], index: 5, kind: output, shape index: {}]
  %s6 = sld [smem:[#allocation0]]
  $region34: #{decode.12} parent=0
    _
  %s8 = ssub.s32 1, %s6
  %s9 = scalar_select 0, %s8, %s6
  // Predicated region
  $region2: #{decode.12} parent=0 // pred_check
    _
  $region3: #{decode.12} parent=0 // pred_check_branch
    %11 = sbr.rel (0) target = $region5
  $region4: #{decode.12} parent=0 // pred_region
    _
  $region5: #{decode.12} parent=0 // pred_fallthru
    _
  // Predicated region
  $region6: #{decode.12} parent=0 // pred_check
    _
  $region7: #{decode.12} parent=0 // pred_check_branch
    %13 = sbr.rel (0) target = $region9
  $region8: #{decode.12} parent=0 // pred_region
    _
  $region9: #{decode.12} parent=0 // pred_fallthru
    _
  // Predicated region
  $region10: #{decode.12} parent=0 // pred_check
    _
  $region11: #{decode.12} parent=0 // pred_check_branch
    %15 = sbr.rel (0) target = $region13
  $region12: #{decode.12} parent=0 // pred_region
    _
  $region13: #{decode.12} parent=0 // pred_fallthru
    _
  // Predicated region
  $region14: #{decode.12} parent=0 // pred_check
    _
  $region15: #{decode.12} parent=0 // pred_check_branch
    %17 = sbr.rel (0) target = $region17
  $region16: #{decode.12} parent=0 // pred_region
    _
  $region17: #{decode.12} parent=0 // pred_fallthru
    _
  // Predicated region
  $region18: #{decode.12} parent=0 // pred_check
    _
  $region19: #{decode.12} parent=0 // pred_check_branch
    %19 = sbr.rel (0) target = $region21
  $region20: #{decode.12} parent=0 // pred_region
    _
  $region21: #{decode.12} parent=0 // pred_fallthru
    _
  %p21 = scmp.eq.s32.totalorder 0, 0
  // Predicated region
  $region22: #{decode.12} parent=0 // pred_check
    %p22 = pneg %p21
  $region23: #{decode.12} parent=0 // pred_check_branch
    %24 = sbr.rel (%p22) target = $region25
  $region24: #{decode.12} parent=0 // pred_region
    %v25 = vld [vmem:[%s0] sm:$0xf]
    %v26 = vld [vmem:[%s0 + $0x4] sm:$0xf]
    %v27 = vunpack.c.l.bf16 %v25
    %v28 = vunpack.c.l.bf16 %v26
    %vm29 = vcmask 261120
    %v30 = vsel %vm29, %v27, 0.0
    %31 = vadd.xlane.f32.xlu0 %v30
    %v32 = vpop.xlane.xlu0 %31
    %v33 = vsel %vm29, %v28, 0.0
    %34 = vadd.xlane.f32.xlu0 %v33
    %v35 = vpop.xlane.xlu0 %34
    %v36 = vrcp.pop 32.0
    %v37 = vmul.f32 %v32, %v36
    %v38 = vmul.f32 %v35, %v36
    %v39 = vsub.f32 %v27, %v37
    %v40 = vsub.f32 %v28, %v38
    %v41 = vmul.f32 %v39, %v39
    %v42 = vmul.f32 %v40, %v40
    %v43 = vsel %vm29, %v41, 0.0
    %44 = vadd.xlane.f32.xlu0 %v43
    %v45 = vpop.xlane.xlu0 %44
    %v46 = vsel %vm29, %v42, 0.0
    %47 = vadd.xlane.f32.xlu0 %v46
    %v48 = vpop.xlane.xlu0 %47
    %v49 = vmul.f32 %v45, %v36
    %v50 = vmul.f32 %v48, %v36
    %v51 = vadd.f32 %v49, 1e-05
    %v52 = vadd.f32 %v50, 1e-05
    %v53 = vrsqrt.pop %v51
    %v54 = vrsqrt.pop %v52
    %v55 = vmul.f32 %v39, %v53
    %v56 = vmul.f32 %v40, %v54
    %v57 = vld [vmem:[%s1] sm:$0x1]
    %v59 = vlaneseq
    %v60 = vshrl.u32 %v59, 7
    %v61 = vsub.s32 0, %v60
    %v62 = vrot.slane %v57, %v61
    %v64 = vmul.f32 %v55, %v62
    %v65 = vmul.f32 %v56, %v62
    %v66 = vld [vmem:[%s2] sm:$0x1]
    %v68 = vlaneseq
    %v69 = vshrl.u32 %v68, 7
    %v70 = vsub.s32 0, %v69
    %v71 = vrot.slane %v66, %v70
    %v73 = vadd.f32 %v64, %v71
    %v74 = vadd.f32 %v65, %v71
    %v75 = vpack.c.bf16 %v74, %v73
    %v77 = vunpack.c.l.b16 %v75
    %v78 = vunpack.c.h.b16 %v75
    %v79 = vpack.c.b16 %v77, %v77
    %v80 = vpack.c.b16 %v78, %v78
    %vm83 = vcmask 257024
    %84 = vst.msk [vmem:[#allocation2] sm:$0xf] %vm83, %v79
    %85 = vst.msk [vmem:[#allocation2 + $0x4] sm:$0xf] %vm83, %v80
  $region25: #{decode.12} parent=0 // pred_fallthru
    _
  %v86 = vld [vmem:[#allocation2] sm:$0xf]
  %v87 = vld [vmem:[#allocation2 + $0x4] sm:$0xf]
  %v88 = vld [vmem:[%s3] sm:$0xf]
  %v89 = vld [vmem:[%s3 + $0x4] sm:$0xf]
  %v90 = vld [vmem:[%s3 + $0x8] sm:$0xf]
  %v91 = vld [vmem:[%s3 + $0xc] sm:$0xf]
  %v92 = vld [vmem:[%s4] sm:$0x1]
  %v94 = vlaneseq
  %v95 = vshrl.u32 %v94, 7
  %v96 = vsub.s32 0, %v95
  %v97 = vrot.slane %v92, %v96
  %v101 = vunpack.c.l.b16 %v86
  %v102 = vunpack.c.l.b16 %v87
  %v103 = vpack.c.b16 %v102, %v101
  %v108 = vunpack.c.l.b16 %v88
  %v109 = vunpack.c.l.b16 %v89
  %v110 = vunpack.c.l.b16 %v90
  %v111 = vunpack.c.l.b16 %v91
  %v112 = vpack.c.b16 %v109, %v108
  %v113 = vpack.c.b16 %v111, %v110
  %vm116 = vcmask 261120
  %v118 = vsel %vm116, %v103, 0
  %120 = vmatprep.subr.bf16.mxu0 0
  %121 = vmatpush1.bf16.msra.mxu0 0
  %122 = vmatprep.subr.bf16.mxu0 0
  %123 = vmatpush1.bf16.msra.mxu0 0
  %124 = vmatprep.subr.bf16.mxu0 0
  %125 = vmatpush1.bf16.msra.mxu0 0
  %126 = vmatprep.subr.bf16.mxu0 0
  %127 = vmatpush1.bf16.msra.mxu0 0
  %128 = vmatprep.subr.bf16.mxu0 0
  %129 = vmatpush1.bf16.msra.mxu0 0
  %130 = vmatprep.subr.bf16.mxu0 0
  %131 = vmatpush1.bf16.msra.mxu0 0
  %132 = vmatprep.subr.bf16.mxu0 0
  %133 = vmatpush1.bf16.msra.mxu0 %v113
  %134 = vmatprep.subr.bf16.mxu0 0
  %135 = vmatpush1.bf16.msra.mxu0 %v112
  %136 = vmatprep.subr.bf16.mxu0 0
  %137 = vmatpush2.bf16.msra.mxu0 0
  %138 = vmatprep.subr.bf16.mxu0 0
  %139 = vmatpush2.bf16.msra.mxu0 0
  %140 = vmatprep.subr.bf16.mxu0 0
  %141 = vmatpush2.bf16.msra.mxu0 0
  %142 = vmatprep.subr.bf16.mxu0 0
  %143 = vmatpush2.bf16.msra.mxu0 0
  %144 = vmatprep.subr.bf16.mxu0 0
  %145 = vmatpush2.bf16.msra.mxu0 0
  %146 = vmatprep.subr.bf16.mxu0 0
  %147 = vmatpush2.bf16.msra.mxu0 0
  %148 = vmatprep.subr.bf16.mxu0 0
  %149 = vmatpush2.bf16.msra.mxu0 0
  %150 = vmatprep.subr.bf16.mxu0 0
  %151 = vmatpush2.bf16.msra.mxu0 0
  %152 = vmatprep.mubr.bf16.mxu0 0
  %153 = vmatmul.mubr.bf16.gmra.mxu0 %v118
  %v154 = vpop.f32.mrf.mxu0
  %v155 = vadd.f32 %v97, %v154
  %v156 = vpop.f32.mrf.mxu0
  %v157 = vpop.f32.mrf.mxu0
  %v158 = vadd.f32 %v97, %v157
  %v159 = vpop.f32.mrf.mxu0
  %160 = vdwg.mxu0
  %v161 = vpack.c.bf16 %v158, %v155
  %v163 = vunpack.c.l.b16 %v161
  %v164 = vunpack.c.h.b16 %v161
  %v165 = vpack.c.b16 %v163, %v163
  %v166 = vpack.c.b16 %v164, %v164
  %vm169 = vcmask 781312
  %170 = vst.msk [vmem:[%s5] sm:$0xf] %vm169, %v165
  %171 = vst.msk [vmem:[%s5 + $0x4] sm:$0xf] %vm169, %v166
  // Predicated region
  $region26: #{decode.12} parent=0 // pred_check
    _
  $region27: #{decode.12} parent=0 // pred_check_branch
    %173 = sbr.rel (0) target = $region29
  $region28: #{decode.12} parent=0 // pred_region
    _
  $region29: #{decode.12} parent=0 // pred_fallthru
    _
  // Predicated region
  $region30: #{decode.12} parent=0 // pred_check
    _
  $region31: #{decode.12} parent=0 // pred_check_branch
    %175 = sbr.rel (0) target = $region33
  $region32: #{decode.12} parent=0 // pred_region
    _
  $region33: #{decode.12} parent=0 // pred_fallthru
    _

// kernel: decode.15
$region0: #{decode.15}
  #allocation0 [shape = 'u32[]', space=smem, size = 0x4, offset = 0x4, fixed_abs, tag = 'smem constant byte address 0x4 - core index']
  #allocation1 [shape = 'u32[144,128]{1,0:T(1,128)}', space=vmem, size = 0x12000, scoped, tag = 'internal scratch']
  #allocation2 [shape = 'bf16[16,32]{1,0:T(8,128)(2,1)}', space=vmem, size = 0x1000, scoped, tag = 'scratch operand']
  %s0 = inlined_call_operand.vmem [shape: bf16[16,32], index: 0, kind: input, shape index: {}]
  %s1 = inlined_call_operand.vmem [shape: f32[1,32], index: 1, kind: input, shape index: {}]
  %s2 = inlined_call_operand.vmem [shape: f32[1,32], index: 2, kind: input, shape index: {}]
  %s3 = inlined_call_operand.vmem [shape: bf16[32,128], index: 3, kind: input, shape index: {}]
  %s4 = inlined_call_operand.vmem [shape: f32[1,128], index: 4, kind: input, shape index: {}]
  %s5 = inlined_call_operand.vmem [shape: bf16[16,128], index: 5, kind: output, shape index: {}]
  %s6 = sld [smem:[#allocation0]]
  $region34: #{decode.15} parent=0
    _
  %s8 = ssub.s32 1, %s6
  %s9 = scalar_select 0, %s8, %s6
  // Predicated region
  $region2: #{decode.15} parent=0 // pred_check
    _
  $region3: #{decode.15} parent=0 // pred_check_branch
    %11 = sbr.rel (0) target = $region5
  $region4: #{decode.15} parent=0 // pred_region
    _
  $region5: #{decode.15} parent=0 // pred_fallthru
    _
  // Predicated region
  $region6: #{decode.15} parent=0 // pred_check
    _
  $region7: #{decode.15} parent=0 // pred_check_branch
    %13 = sbr.rel (0) target = $region9
  $region8: #{decode.15} parent=0 // pred_region
    _
  $region9: #{decode.15} parent=0 // pred_fallthru
    _
  // Predicated region
  $region10: #{decode.15} parent=0 // pred_check
    _
  $region11: #{decode.15} parent=0 // pred_check_branch
    %15 = sbr.rel (0) target = $region13
  $region12: #{decode.15} parent=0 // pred_region
    _
  $region13: #{decode.15} parent=0 // pred_fallthru
    _
  // Predicated region
  $region14: #{decode.15} parent=0 // pred_check
    _
  $region15: #{decode.15} parent=0 // pred_check_branch
    %17 = sbr.rel (0) target = $region17
  $region16: #{decode.15} parent=0 // pred_region
    _
  $region17: #{decode.15} parent=0 // pred_fallthru
    _
  // Predicated region
  $region18: #{decode.15} parent=0 // pred_check
    _
  $region19: #{decode.15} parent=0 // pred_check_branch
    %19 = sbr.rel (0) target = $region21
  $region20: #{decode.15} parent=0 // pred_region
    _
  $region21: #{decode.15} parent=0 // pred_fallthru
    _
  %p21 = scmp.eq.s32.totalorder 0, 0
  // Predicated region
  $region22: #{decode.15} parent=0 // pred_check
    %p22 = pneg %p21
  $region23: #{decode.15} parent=0 // pred_check_branch
    %24 = sbr.rel (%p22) target = $region25
  $region24: #{decode.15} parent=0 // pred_region
    %v25 = vld [vmem:[%s0] sm:$0xf]
    %v26 = vld [vmem:[%s0 + $0x4] sm:$0xf]
    %v27 = vunpack.c.l.bf16 %v25
    %v28 = vunpack.c.l.bf16 %v26
    %vm29 = vcmask 261120
    %v30 = vsel %vm29, %v27, 0.0
    %31 = vadd.xlane.f32.xlu0 %v30
    %v32 = vpop.xlane.xlu0 %31
    %v33 = vsel %vm29, %v28, 0.0
    %34 = vadd.xlane.f32.xlu0 %v33
    %v35 = vpop.xlane.xlu0 %34
    %v36 = vrcp.pop 32.0
    %v37 = vmul.f32 %v32, %v36
    %v38 = vmul.f32 %v35, %v36
    %v39 = vsub.f32 %v27, %v37
    %v40 = vsub.f32 %v28, %v38
    %v41 = vmul.f32 %v39, %v39
    %v42 = vmul.f32 %v40, %v40
    %v43 = vsel %vm29, %v41, 0.0
    %44 = vadd.xlane.f32.xlu0 %v43
    %v45 = vpop.xlane.xlu0 %44
    %v46 = vsel %vm29, %v42, 0.0
    %47 = vadd.xlane.f32.xlu0 %v46
    %v48 = vpop.xlane.xlu0 %47
    %v49 = vmul.f32 %v45, %v36
    %v50 = vmul.f32 %v48, %v36
    %v51 = vadd.f32 %v49, 1e-05
    %v52 = vadd.f32 %v50, 1e-05
    %v53 = vrsqrt.pop %v51
    %v54 = vrsqrt.pop %v52
    %v55 = vmul.f32 %v39, %v53
    %v56 = vmul.f32 %v40, %v54
    %v57 = vld [vmem:[%s1] sm:$0x1]
    %v59 = vlaneseq
    %v60 = vshrl.u32 %v59, 7
    %v61 = vsub.s32 0, %v60
    %v62 = vrot.slane %v57, %v61
    %v64 = vmul.f32 %v55, %v62
    %v65 = vmul.f32 %v56, %v62
    %v66 = vld [vmem:[%s2] sm:$0x1]
    %v68 = vlaneseq
    %v69 = vshrl.u32 %v68, 7
    %v70 = vsub.s32 0, %v69
    %v71 = vrot.slane %v66, %v70
    %v73 = vadd.f32 %v64, %v71
    %v74 = vadd.f32 %v65, %v71
    %v75 = vpack.c.bf16 %v74, %v73
    %v77 = vunpack.c.l.b16 %v75
    %v78 = vunpack.c.h.b16 %v75
    %v79 = vpack.c.b16 %v77, %v77
    %v80 = vpack.c.b16 %v78, %v78
    %vm83 = vcmask 257024
    %84 = vst.msk [vmem:[#allocation2] sm:$0xf] %vm83, %v79
    %85 = vst.msk [vmem:[#allocation2 + $0x4] sm:$0xf] %vm83, %v80
  $region25: #{decode.15} parent=0 // pred_fallthru
    _
  %v86 = vld [vmem:[#allocation2] sm:$0xf]
  %v87 = vld [vmem:[#allocation2 + $0x4] sm:$0xf]
  %v88 = vld [vmem:[%s3] sm:$0xf]
  %v89 = vld [vmem:[%s3 + $0x4] sm:$0xf]
  %v90 = vld [vmem:[%s3 + $0x8] sm:$0xf]
  %v91 = vld [vmem:[%s3 + $0xc] sm:$0xf]
  %v92 = vld [vmem:[%s4] sm:$0x1]
  %v94 = vlaneseq
  %v95 = vshrl.u32 %v94, 7
  %v96 = vsub.s32 0, %v95
  %v97 = vrot.slane %v92, %v96
  %v101 = vunpack.c.l.b16 %v86
  %v102 = vunpack.c.l.b16 %v87
  %v103 = vpack.c.b16 %v102, %v101
  %v108 = vunpack.c.l.b16 %v88
  %v109 = vunpack.c.l.b16 %v89
  %v110 = vunpack.c.l.b16 %v90
  %v111 = vunpack.c.l.b16 %v91
  %v112 = vpack.c.b16 %v109, %v108
  %v113 = vpack.c.b16 %v111, %v110
  %vm116 = vcmask 261120
  %v118 = vsel %vm116, %v103, 0
  %120 = vmatprep.subr.bf16.mxu0 0
  %121 = vmatpush1.bf16.msra.mxu0 0
  %122 = vmatprep.subr.bf16.mxu0 0
  %123 = vmatpush1.bf16.msra.mxu0 0
  %124 = vmatprep.subr.bf16.mxu0 0
  %125 = vmatpush1.bf16.msra.mxu0 0
  %126 = vmatprep.subr.bf16.mxu0 0
  %127 = vmatpush1.bf16.msra.mxu0 0
  %128 = vmatprep.subr.bf16.mxu0 0
  %129 = vmatpush1.bf16.msra.mxu0 0
  %130 = vmatprep.subr.bf16.mxu0 0
  %131 = vmatpush1.bf16.msra.mxu0 0
  %132 = vmatprep.subr.bf16.mxu0 0
  %133 = vmatpush1.bf16.msra.mxu0 %v113
  %134 = vmatprep.subr.bf16.mxu0 0
  %135 = vmatpush1.bf16.msra.mxu0 %v112
  %136 = vmatprep.subr.bf16.mxu0 0
  %137 = vmatpush2.bf16.msra.mxu0 0
  %138 = vmatprep.subr.bf16.mxu0 0
  %139 = vmatpush2.bf16.msra.mxu0 0
  %140 = vmatprep.subr.bf16.mxu0 0
  %141 = vmatpush2.bf16.msra.mxu0 0
  %142 = vmatprep.subr.bf16.mxu0 0
  %143 = vmatpush2.bf16.msra.mxu0 0
  %144 = vmatprep.subr.bf16.mxu0 0
  %145 = vmatpush2.bf16.msra.mxu0 0
  %146 = vmatprep.subr.bf16.mxu0 0
  %147 = vmatpush2.bf16.msra.mxu0 0
  %148 = vmatprep.subr.bf16.mxu0 0
  %149 = vmatpush2.bf16.msra.mxu0 0
  %150 = vmatprep.subr.bf16.mxu0 0
  %151 = vmatpush2.bf16.msra.mxu0 0
  %152 = vmatprep.mubr.bf16.mxu0 0
  %153 = vmatmul.mubr.bf16.gmra.mxu0 %v118
  %v154 = vpop.f32.mrf.mxu0
  %v155 = vadd.f32 %v97, %v154
  %v156 = vpop.f32.mrf.mxu0
  %v157 = vpop.f32.mrf.mxu0
  %v158 = vadd.f32 %v97, %v157
  %v159 = vpop.f32.mrf.mxu0
  %160 = vdwg.mxu0
  %v161 = vmul.f32 %v155, %v155
  %v162 = vmul.f32 %v158, %v158
  %v163 = vmul.f32 %v155, %v161
  %v164 = vmul.f32 %v158, %v162
  %v165 = vmul.f32 %v163, 0.044715
  %v166 = vmul.f32 %v164, 0.044715
  %v167 = vadd.f32 %v155, %v165
  %v168 = vadd.f32 %v158, %v166
  %v169 = vmul.f32 %v167, 0.7978846
  %v170 = vmul.f32 %v168, 0.7978846
  %v171 = vtanh.pop %v169
  %v172 = vtanh.pop %v170
  %v173 = vadd.f32 %v171, 1.0
  %v174 = vadd.f32 %v172, 1.0
  %v175 = vmul.f32 %v173, 0.5
  %v176 = vmul.f32 %v174, 0.5
  %v177 = vmul.f32 %v155, %v175
  %v178 = vmul.f32 %v158, %v176
  %v179 = vpack.c.bf16 %v178, %v177
  %v181 = vunpack.c.l.b16 %v179
  %v182 = vunpack.c.h.b16 %v179
  %v183 = vpack.c.b16 %v181, %v181
  %v184 = vpack.c.b16 %v182, %v182
  %187 = vst [vmem:[%s5] sm:$0xf] %v183
  %188 = vst [vmem:[%s5 + $0x4] sm:$0xf] %v184
  // Predicated region
  $region26: #{decode.15} parent=0 // pred_check
    _
  $region27: #{decode.15} parent=0 // pred_check_branch
    %190 = sbr.rel (0) target = $region29
  $region28: #{decode.15} parent=0 // pred_region
    _
  $region29: #{decode.15} parent=0 // pred_fallthru
    _
  // Predicated region
  $region30: #{decode.15} parent=0 // pred_check
    _
  $region31: #{decode.15} parent=0 // pred_check_branch
    %192 = sbr.rel (0) target = $region33
  $region32: #{decode.15} parent=0 // pred_region
    _
  $region33: #{decode.15} parent=0 // pred_fallthru
    _

// kernel: decode.13
$region0: #{decode.13}
  #allocation0 [shape = 'u32[]', space=smem, size = 0x4, offset = 0x4, fixed_abs, tag = 'smem constant byte address 0x4 - core index']
  #allocation1 [shape = 'u32[144,128]{1,0:T(1,128)}', space=vmem, size = 0x12000, scoped, tag = 'internal scratch']
  #allocation2 [shape = 'f32[2,8,128]{2,1,0:T(8,128)}', space=vmem, size = 0x2000, scoped, tag = 'scratch operand']
  #allocation3 [shape = 'f32[2,8,128]{2,1,0:T(8,128)}', space=vmem, size = 0x2000, scoped, tag = 'scratch operand']
  #allocation4 [shape = 'f32[2,8,8]{2,1,0:T(8,128)}', space=vmem, size = 0x2000, scoped, tag = 'scratch operand']
  %s0 = inlined_call_operand.vmem [shape: bf16[8,8,8], index: 0, kind: input, shape index: {}]
  %s1 = inlined_call_operand.vmem [shape: bf16[8,8,8], index: 1, kind: input, shape index: {}]
  %s2 = inlined_call_operand.vmem [shape: bf16[8,8,8], index: 2, kind: input, shape index: {}]
  %s3 = inlined_call_operand.vmem [shape: bf16[8,8,8], index: 3, kind: output, shape index: {}]
  %s4 = sld [smem:[#allocation0]]
  $region61: #{decode.13} parent=0
    _
  %s6 = ssub.s32 1, %s4
  %s7 = scalar_select 0, %s6, %s4
  loop: start=0, step=1, limit=6
  $region2: #{decode.13} parent=0 // loop_pre_header
    _
  $region3: #{decode.13} parent=0 // loop_header
    %s9 = sphi 0, %s13
    %p10 = scmp.ge.s32.totalorder %s9, 6
    %s16 = sphi 0, %s35
    %s17 = sphi 0, %s31
    %s18 = sphi 0, %s27
    %s19 = sphi 0, %s16
    %s20 = sphi 0, %s17
    %s21 = sphi 0, %s18
    %s22 = sphi 0, %s19
    %s23 = sphi 0, %s20
    %s24 = sphi 0, %s21
    %s40 = sphi 0, %s42
    %s43 = sphi 0, %s40
    %s44 = sphi 0, %s43
    %s60 = sphi 0, %s44
    %s72 = sphi 0, %s74
    %s75 = sphi 0, %s72
    %s76 = sphi 0, %s75
    %s92 = sphi 0, %s76
    %s104 = sphi 0, %s106
    %s107 = sphi 0, %s104
    %s108 = sphi 0, %s107
    %s124 = sphi 0, %s108
    %s132 = sphi 0, %s134
    %s135 = sphi 0, %s132
    %s136 = sphi 0, %s135
    %s152 = sphi 0, %s136
  $region4: #{decode.13} parent=0 // loop_header_branch
    %12 = sbr.rel (%p10) target = $region8
  $region5: #{decode.13} parent=0 // loop_body
    %s14 = ssub.s32 %s9, 1
    %s15 = ssub.s32 %s9, 2
    %s25 = sadd.s32 1, %s18
    %p26 = scmp.ge.s32.totalorder %s25, 1
    %s27 = scalar_select %p26, 0, %s25
    %s28 = sadd.s32 1, %s17
    %s29 = scalar_select %p26, %s28, %s17
    %p30 = scmp.ge.s32.totalorder %s29, 1
    %s31 = scalar_select %p30, 0, %s29
    %s32 = sadd.s32 1, %s16
    %s33 = scalar_select %p30, %s32, %s16
    %p34 = scmp.ge.s32.totalorder %s33, 4
    %s35 = scalar_select %p34, 0, %s33
    %s36 = ssub.s32 %s16, %s35
    %s37 = ssub.s32 %s17, %s31
    %s38 = sor.u32 %s36, %s37
    %p39 = scmp.eq.s32.totalorder %s38, 0
    %s41 = sadd.s32 %s40, 1
    %s42 = scalar_select %p39, %s40, %s41
    %p45 = pneg %p39
    %p46 = scmp.eq.s32.totalorder %s9, 3
    %p47 = por %p45, %p46
    %p48 = scmp.ne.s32.totalorder %s40, %s43
    %p49 = scmp.eq.s32.totalorder %s9, 0
    %p50 = por %p48, %p49
    %p51 = scmp.ne.s32.totalorder %s40, %s43
    %p52 = scmp.eq.s32.totalorder %s14, 3
    %p53 = por %p51, %p52
    %p54 = scmp.ne.s32.totalorder %s43, %s44
    %p55 = scmp.eq.s32.totalorder %s14, 0
    %p56 = por %p54, %p55
    %p57 = scmp.ne.s32.totalorder %s43, %s44
    %p58 = scmp.eq.s32.totalorder %s15, 3
    %p59 = por %p57, %p58
    %p61 = scmp.ne.s32.totalorder %s44, %s60
    %p62 = scmp.eq.s32.totalorder %s15, 0
    %p63 = por %p61, %p62
    %p64 = scmp.lt.s32.totalorder %s18, %s17
    %s65 = scalar_select %p64, %s18, %s17
    %p66 = scmp.lt.s32.totalorder %s27, %s31
    %s67 = scalar_select %p66, %s27, %s31
    %s68 = ssub.s32 %s16, %s35
    %s69 = ssub.s32 %s65, %s67
    %s70 = sor.u32 %s68, %s69
    %p71 = scmp.eq.s32.totalorder %s70, 0
    %s73 = sadd.s32 %s72, 1
    %s74 = scalar_select %p71, %s72, %s73
    %p77 = pneg %p71
    %p78 = scmp.eq.s32.totalorder %s9, 3
    %p79 = por %p77, %p78
    %p80 = scmp.ne.s32.totalorder %s72, %s75
    %p81 = scmp.eq.s32.totalorder %s9, 0
    %p82 = por %p80, %p81
    %p83 = scmp.ne.s32.totalorder %s72, %s75
    %p84 = scmp.eq.s32.totalorder %s14, 3
    %p85 = por %p83, %p84
    %p86 = scmp.ne.s32.totalorder %s75, %s76
    %p87 = scmp.eq.s32.totalorder %s14, 0
    %p88 = por %p86, %p87
    %p89 = scmp.ne.s32.totalorder %s75, %s76
    %p90 = scmp.eq.s32.totalorder %s15, 3
    %p91 = por %p89, %p90
    %p93 = scmp.ne.s32.totalorder %s76, %s92
    %p94 = scmp.eq.s32.totalorder %s15, 0
    %p95 = por %p93, %p94
    %p96 = scmp.lt.s32.totalorder %s18, %s17
    %s97 = scalar_select %p96, %s18, %s17
    %p98 = scmp.lt.s32.totalorder %s27, %s31
    %s99 = scalar_select %p98, %s27, %s31
    %s100 = ssub.s32 %s16, %s35
    %s101 = ssub.s32 %s97, %s99
    %s102 = sor.u32 %s100, %s101
    %p103 = scmp.eq.s32.totalorder %s102, 0
    %s105 = sadd.s32 %s104, 1
    %s106 = scalar_select %p103, %s104, %s105
    %p109 = pneg %p103
    %p110 = scmp.eq.s32.totalorder %s9, 3
    %p111 = por %p109, %p110
    %p112 = scmp.ne.s32.totalorder %s104, %s107
    %p113 = scmp.eq.s32.totalorder %s9, 0
    %p114 = por %p112, %p113
    %p115 = scmp.ne.s32.totalorder %s104, %s107
    %p116 = scmp.eq.s32.totalorder %s14, 3
    %p117 = por %p115, %p116
    %p118 = scmp.ne.s32.totalorder %s107, %s108
    %p119 = scmp.eq.s32.totalorder %s14, 0
    %p120 = por %p118, %p119
    %p121 = scmp.ne.s32.totalorder %s107, %s108
    %p122 = scmp.eq.s32.totalorder %s15, 3
    %p123 = por %p121, %p122
    %p125 = scmp.ne.s32.totalorder %s108, %s124
    %p126 = scmp.eq.s32.totalorder %s15, 0
    %p127 = por %p125, %p126
    %s128 = ssub.s32 %s16, %s35
    %s129 = ssub.s32 %s17, %s31
    %s130 = sor.u32 %s128, %s129
    %p131 = scmp.eq.s32.totalorder %s130, 0
    %s133 = sadd.s32 %s132, 1
    %s134 = scalar_select %p131, %s132, %s133
    %p137 = pneg %p131
    %p138 = scmp.eq.s32.totalorder %s9, 3
    %p139 = por %p137, %p138
    %p140 = scmp.ne.s32.totalorder %s132, %s135
    %p141 = scmp.eq.s32.totalorder %s9, 0
    %p142 = por %p140, %p141
    %p143 = scmp.ne.s32.totalorder %s132, %s135
    %p144 = scmp.eq.s32.totalorder %s14, 3
    %p145 = por %p143, %p144
    %p146 = scmp.ne.s32.totalorder %s135, %s136
    %p147 = scmp.eq.s32.totalorder %s14, 0
    %p148 = por %p146, %p147
    %p149 = scmp.ne.s32.totalorder %s135, %s136
    %p150 = scmp.eq.s32.totalorder %s15, 3
    %p151 = por %p149, %p150
    %p153 = scmp.ne.s32.totalorder %s136, %s152
    %p154 = scmp.eq.s32.totalorder %s15, 0
    %p155 = por %p153, %p154
    %p156 = scmp.le.s32.totalorder 1, %s9
    %p157 = scmp.lt.s32.totalorder %s9, 5
    %p158 = pnand %p156, %p157
    %p159 = pneg %p158
    // Predicated region
    $region9: #{decode.13} parent=5 // pred_check
      _
    $region10: #{decode.13} parent=5 // pred_check_branch
      %161 = sbr.rel (%p158) target = $region12
    $region11: #{decode.13} parent=5 // pred_region
      %s162 = ssub.s32 %s9, 1
    $region12: #{decode.13} parent=5 // pred_fallthru
      _
    %p163 = scmp.lt.s32.totalorder %s9, 4
    // Predicated region
    $region13: #{decode.13} parent=5 // pred_check
      %p164 = pneg %p163
    $region14: #{decode.13} parent=5 // pred_check_branch
      %166 = sbr.rel (%p164) target = $region16
    $region15: #{decode.13} parent=5 // pred_region
      // Predicated region
      $region17: #{decode.13} parent=15 // pred_check
        %p167 = pneg %p50
      $region18: #{decode.13} parent=15 // pred_check_branch
        %169 = sbr.rel (%p167) target = $region20
      $region19: #{decode.13} parent=15 // pred_region
        %s170 = smul.u32 2, %s16
        %p171 = scmp.lt.s32.totalorder %s170, 7
        %s172 = scalar_select %p171, %s170, 7
        %p173 = scmp.lt.s32.totalorder %s17, 0
        %s174 = scalar_select %p173, %s17, 0
        %s175 = sadd.s32 %s174, %s172
        %s176 = smul.addr %s175, 4
        %s177 = scalar_lea.vmem %s0, %s176
        %s178 = smul.u32 2, %s16
      $region20: #{decode.13} parent=15 // pred_fallthru
        _
      // Predicated region
      $region21: #{decode.13} parent=15 // pred_check
        %p179 = pneg %p82
      $region22: #{decode.13} parent=15 // pred_check_branch
        %181 = sbr.rel (%p179) target = $region24
      $region23: #{decode.13} parent=15 // pred_region
        %p182 = scmp.lt.s32.totalorder %s18, %s17
        %s183 = scalar_select %p182, %s18, %s17
        %s184 = smul.u32 2, %s16
        %p185 = scmp.lt.s32.totalorder %s184, 7
        %s186 = scalar_select %p185, %s184, 7
        %p187 = scmp.lt.s32.totalorder %s183, 0
        %s188 = scalar_select %p187, %s183, 0
        %s189 = sadd.s32 %s188, %s186
        %s190 = smul.addr %s189, 4
        %s191 = scalar_lea.vmem %s1, %s190
        %p192 = scmp.lt.s32.totalorder %s18, %s17
        %s193 = scalar_select %p192, %s18, %s17
        %s194 = smul.u32 2, %s16
      $region24: #{decode.13} parent=15 // pred_fallthru
        _
      // Predicated region
      $region25: #{decode.13} parent=15 // pred_check
        %p195 = pneg %p114
      $region26: #{decode.13} parent=15 // pred_check_branch
        %197 = sbr.rel (%p195) target = $region28
      $region27: #{decode.13} parent=15 // pred_region
        %p198 = scmp.lt.s32.totalorder %s18, %s17
        %s199 = scalar_select %p198, %s18, %s17
        %s200 = smul.u32 2, %s16
        %p201 = scmp.lt.s32.totalorder %s200, 7
        %s202 = scalar_select %p201, %s200, 7
        %p203 = scmp.lt.s32.totalorder %s199, 0
        %s204 = scalar_select %p203, %s199, 0
        %s205 = sadd.s32 %s204, %s202
        %s206 = smul.addr %s205, 4
        %s207 = scalar_lea.vmem %s2, %s206
        %p208 = scmp.lt.s32.totalorder %s18, %s17
        %s209 = scalar_select %p208, %s18, %s17
        %s210 = smul.u32 2, %s16
      $region28: #{decode.13} parent=15 // pred_fallthru
        _
    $region16: #{decode.13} parent=5 // pred_fallthru
      _
    %p211 = scmp.le.s32.totalorder 1, %s9
    %p212 = scmp.lt.s32.totalorder %s9, 5
    %p213 = pnand %p211, %p212
    %p214 = pneg %p213
    // Predicated region
    $region29: #{decode.13} parent=5 // pred_check
      _
    $region30: #{decode.13} parent=5 // pred_check_branch
      %216 = sbr.rel (%p213) target = $region32
    $region31: #{decode.13} parent=5 // pred_region
      %s217 = ssub.s32 %s9, 1
      %s218 = smul.u32 2, %s19
      %p219 = scmp.lt.s32.totalorder %s218, 7
      %s220 = scalar_select %p219, %s218, 7
      %p221 = scmp.lt.s32.totalorder %s20, 0
      %s222 = scalar_select %p221, %s20, 0
      %s223 = sadd.s32 %s222, %s220
      %s224 = smul.addr %s223, 4
      %s225 = scalar_lea.vmem %s0, %s224
      %p226 = pneg %p56
      %p227 = pneg %p53
      %p228 = scmp.lt.s32.totalorder %s21, %s20
      %s229 = scalar_select %p228, %s21, %s20
      %s230 = smul.u32 2, %s19
      %p231 = scmp.lt.s32.totalorder %s230, 7
      %s232 = scalar_select %p231, %s230, 7
      %p233 = scmp.lt.s32.totalorder %s229, 0
      %s234 = scalar_select %p233, %s229, 0
      %s235 = sadd.s32 %s234, %s232
      %s236 = smul.addr %s235, 4
      %s237 = scalar_lea.vmem %s1, %s236
      %p238 = pneg %p88
      %p239 = pneg %p85
      %p240 = scmp.lt.s32.totalorder %s21, %s20
      %s241 = scalar_select %p240, %s21, %s20
      %s242 = smul.u32 2, %s19
      %p243 = scmp.lt.s32.totalorder %s242, 7
      %s244 = scalar_select %p243, %s242, 7
      %p245 = scmp.lt.s32.totalorder %s241, 0
      %s246 = scalar_select %p245, %s241, 0
      %s247 = sadd.s32 %s246, %s244
      %s248 = smul.addr %s247, 4
      %s249 = scalar_lea.vmem %s2, %s248
      %p250 = pneg %p120
      %p251 = pneg %p117
      %p252 = pneg %p148
      %p253 = pneg %p145
      %s254 = smul.u32 2, %s19
      %p255 = scmp.lt.s32.totalorder %s254, 7
      %s256 = scalar_select %p255, %s254, 7
      %p257 = scmp.lt.s32.totalorder %s20, 0
      %s258 = scalar_select %p257, %s20, 0
      %s259 = sadd.s32 %s258, %s256
      %s260 = smul.addr %s259, 4
      %s261 = scalar_lea.vmem %s3, %s260
      %s262 = smul.u32 2, %s19
      %p263 = scmp.lt.s32.totalorder %s262, 7
      %s264 = scalar_select %p263, %s262, 7
      %p265 = scmp.lt.s32.totalorder %s20, 0
      %s266 = scalar_select %p265, %s20, 0
      %s267 = sadd.s32 %s266, %s264
      %s268 = smul.addr %s267, 4
      %s269 = scalar_lea.vmem %s0, %s268
      %s270 = smul.u32 2, %s19
      %p271 = scmp.lt.s32.totalorder %s21, %s20
      %s272 = scalar_select %p271, %s21, %s20
      %s273 = smul.u32 2, %s19
      %p274 = scmp.lt.s32.totalorder %s273, 7
      %s275 = scalar_select %p274, %s273, 7
      %p276 = scmp.lt.s32.totalorder %s272, 0
      %s277 = scalar_select %p276, %s272, 0
      %s278 = sadd.s32 %s277, %s275
      %s279 = smul.addr %s278, 4
      %s280 = scalar_lea.vmem %s1, %s279
      %p281 = scmp.lt.s32.totalorder %s21, %s20
      %s282 = scalar_select %p281, %s21, %s20
      %s283 = smul.u32 2, %s19
      %p284 = scmp.lt.s32.totalorder %s21, %s20
      %s285 = scalar_select %p284, %s21, %s20
      %s286 = smul.u32 2, %s19
      %p287 = scmp.lt.s32.totalorder %s286, 7
      %s288 = scalar_select %p287, %s286, 7
      %p289 = scmp.lt.s32.totalorder %s285, 0
      %s290 = scalar_select %p289, %s285, 0
      %s291 = sadd.s32 %s290, %s288
      %s292 = smul.addr %s291, 4
      %s293 = scalar_lea.vmem %s2, %s292
      %p294 = scmp.lt.s32.totalorder %s21, %s20
      %s295 = scalar_select %p294, %s21, %s20
      %s296 = smul.u32 2, %s19
      %s297 = smul.u32 2, %s19
      %p298 = scmp.lt.s32.totalorder %s297, 7
      %s299 = scalar_select %p298, %s297, 7
      %p300 = scmp.lt.s32.totalorder %s20, 0
      %s301 = scalar_select %p300, %s20, 0
      %s302 = sadd.s32 %s301, %s299
      %s303 = smul.addr %s302, 4
      %s304 = scalar_lea.vmem %s3, %s303
      %s305 = smul.u32 2, %s19
      %p307 = scmp.eq.s32.totalorder %s21, 0
      // Predicated region
      $region33: #{decode.13} parent=31 // pred_check
        %p308 = pneg %p307
      $region34: #{decode.13} parent=31 // pred_check_branch
        %310 = sbr.rel (%p308) target = $region36
      $region35: #{decode.13} parent=31 // pred_region
        %311 = vst [vmem:[#allocation2] sm:$0xff] -1e+30
        %312 = vst [vmem:[#allocation2 + $0x8] sm:$0xff] -1e+30
        %313 = vst [vmem:[#allocation3] sm:$0xff] 0.0
        %314 = vst [vmem:[#allocation3 + $0x8] sm:$0xff] 0.0
        %vm315 = vcmask 64512
        %316 = vst.msk [vmem:[#allocation4] sm:$0xff] %vm315, 0.0
        %317 = vst.msk [vmem:[#allocation4 + $0x8] sm:$0xff] %vm315, 0.0
      $region36: #{decode.13} parent=31 // pred_fallthru
        _
      %p318 = scmp.lt.s32.totalorder %s21, %s20
      // Predicated region
      $region37: #{decode.13} parent=31 // pred_check
        %p319 = pneg %p318
      $region38: #{decode.13} parent=31 // pred_check_branch
        %321 = sbr.rel (%p319) target = $region40
      $region39: #{decode.13} parent=31 // pred_region
        %v322 = vld [vmem:[%s269] sm:$0xf]
        %v323 = vld [vmem:[%s269 + $0x4] sm:$0xf]
        %v324 = vld [vmem:[%s280] sm:$0xf]
        %v325 = vld [vmem:[%s280 + $0x4] sm:$0xf]
        %vm326 = vcmask 64512
        %v328 = vsel %vm326, %v322, 0
        %v331 = vsel %vm326, %v324, 0
        %333 = vmatprep.subr.bf16.mxu0 0
        %334 = vmatpush1.bf16.xpose.msra.mxu0 0
        %335 = vmatprep.subr.bf16.mxu0 0
        %336 = vmatpush1.bf16.xpose.msra.mxu0 0
        %337 = vmatprep.subr.bf16.mxu0 0
        %338 = vmatpush1.bf16.xpose.msra.mxu0 0
        %339 = vmatprep.subr.bf16.mxu0 0
        %340 = vmatpush1.bf16.xpose.msra.mxu0 0
        %341 = vmatprep.subr.bf16.mxu0 0
        %342 = vmatpush1.bf16.xpose.msra.mxu0 0
        %343 = vmatprep.subr.bf16.mxu0 0
        %344 = vmatpush1.bf16.xpose.msra.mxu0 0
        %345 = vmatprep.subr.bf16.mxu0 0
        %346 = vmatpush1.bf16.xpose.msra.mxu0 0
        %347 = vmatprep.subr.bf16.mxu0 0
        %348 = vmatpush1.bf16.xpose.msra.mxu0 %v331
        %349 = vmatprep.subr.bf16.mxu0 0
        %350 = vmatpush2.bf16.xpose.msra.mxu0 0
        %351 = vmatprep.subr.bf16.mxu0 0
        %352 = vmatpush2.bf16.xpose.msra.mxu0 0
        %353 = vmatprep.subr.bf16.mxu0 0
        %354 = vmatpush2.bf16.xpose.msra.mxu0 0
        %355 = vmatprep.subr.bf16.mxu0 0
        %356 = vmatpush2.bf16.xpose.msra.mxu0 0
        %357 = vmatprep.subr.bf16.mxu0 0
        %358 = vmatpush2.bf16.xpose.msra.mxu0 0
        %359 = vmatprep.subr.bf16.mxu0 0
        %360 = vmatpush2.bf16.xpose.msra.mxu0 0
        %361 = vmatprep.subr.bf16.mxu0 0
        %362 = vmatpush2.bf16.xpose.msra.mxu0 0
        %363 = vmatprep.subr.bf16.mxu0 0
        %364 = vmatpush2.bf16.xpose.msra.mxu0 0
        %365 = vmatprep.mubr.bf16.mxu0 0
        %366 = vmatmul.mubr.bf16.gmra.mxu0 %v328
        %v367 = vpop.f32.mrf.mxu0
        %v368 = vadd.f32 0.0, %v367
        %v369 = vpop.f32.mrf.mxu0
        %v370 = vpop.f32.mrf.mxu0
        %v371 = vpop.f32.mrf.mxu0
        %372 = vdwg.mxu0
        %v374 = vsel %vm326, %v323, 0
        %v377 = vsel %vm326, %v325, 0
        %379 = vmatprep.subr.bf16.mxu0 0
        %380 = vmatpush1.bf16.xpose.msra.mxu0 0
        %381 = vmatprep.subr.bf16.mxu0 0
        %382 = vmatpush1.bf16.xpose.msra.mxu0 0
        %383 = vmatprep.subr.bf16.mxu0 0
        %384 = vmatpush1.bf16.xpose.msra.mxu0 0
        %385 = vmatprep.subr.bf16.mxu0 0
        %386 = vmatpush1.bf16.xpose.msra.mxu0 0
        %387 = vmatprep.subr.bf16.mxu0 0
        %388 = vmatpush1.bf16.xpose.msra.mxu0 0
        %389 = vmatprep.subr.bf16.mxu0 0
        %390 = vmatpush1.bf16.xpose.msra.mxu0 0
        %391 = vmatprep.subr.bf16.mxu0 0
        %392 = vmatpush1.bf16.xpose.msra.mxu0 0
        %393 = vmatprep.subr.bf16.mxu0 0
        %394 = vmatpush1.bf16.xpose.msra.mxu0 %v377
        %395 = vmatprep.subr.bf16.mxu0 0
        %396 = vmatpush2.bf16.xpose.msra.mxu0 0
        %397 = vmatprep.subr.bf16.mxu0 0
        %398 = vmatpush2.bf16.xpose.msra.mxu0 0
        %399 = vmatprep.subr.bf16.mxu0 0
        %400 = vmatpush2.bf16.xpose.msra.mxu0 0
        %401 = vmatprep.subr.bf16.mxu0 0
        %402 = vmatpush2.bf16.xpose.msra.mxu0 0
        %403 = vmatprep.subr.bf16.mxu0 0
        %404 = vmatpush2.bf16.xpose.msra.mxu0 0
        %405 = vmatprep.subr.bf16.mxu0 0
        %406 = vmatpush2.bf16.xpose.msra.mxu0 0
        %407 = vmatprep.subr.bf16.mxu0 0
        %408 = vmatpush2.bf16.xpose.msra.mxu0 0
        %409 = vmatprep.subr.bf16.mxu0 0
        %410 = vmatpush2.bf16.xpose.msra.mxu0 0
        %411 = vmatprep.mubr.bf16.mxu0 0
        %412 = vmatmul.mubr.bf16.gmra.mxu0 %v374
        %v413 = vpop.f32.mrf.mxu0
        %v414 = vadd.f32 0.0, %v413
        %v415 = vpop.f32.mrf.mxu0
        %v416 = vpop.f32.mrf.mxu0
        %v417 = vpop.f32.mrf.mxu0
        %418 = vdwg.mxu0
        %v419 = vld [vmem:[#allocation2] sm:$0xff]
        %v420 = vld [vmem:[#allocation2 + $0x8] sm:$0xff]
        %v421 = vsel %vm326, %v368, -inf
        %422 = vmax.xlane.f32.xlu0 %v421
        %v423 = vpop.xlane.xlu0 %422
        %v424 = vsel %vm326, %v414, -inf
        %425 = vmax.xlane.f32.xlu0 %v424
        %v426 = vpop.xlane.xlu0 %425
        %v427 = vmax.f32 %v419, %v423
        %v428 = vmax.f32 %v420, %v426
        %v429 = vsub.f32 %v419, %v427
        %v430 = vsub.f32 %v420, %v428
        %v431 = vmul.f32 %v429, 1.442695
        %v432 = vpow.pop %v431
        %v433 = vmul.f32 %v430, 1.442695
        %v434 = vpow.pop %v433
        %436 = vset.pattern.permute.xlu0 0
        %437 = vperm.xlu0 %436, %v427
        %v438 = vpop.permute.xlu0 %437
        %441 = vset.pattern.permute.xlu0 0
        %442 = vperm.xlu0 %441, %v428
        %v443 = vpop.permute.xlu0 %442
        %v445 = vsub.f32 %v368, %v438
        %v446 = vsub.f32 %v414, %v443
        %v447 = vmul.f32 %v445, 1.442695
        %v448 = vpow.pop %v447
        %v449 = vmul.f32 %v446, 1.442695
        %v450 = vpow.pop %v449
        %v451 = vld [vmem:[#allocation3] sm:$0xff]
        %v452 = vld [vmem:[#allocation3 + $0x8] sm:$0xff]
        %v453 = vmul.f32 %v432, %v451
        %v454 = vmul.f32 %v434, %v452
        %v455 = vsel %vm326, %v448, 0.0
        %456 = vadd.xlane.f32.xlu0 %v455
        %v457 = vpop.xlane.xlu0 %456
        %v458 = vsel %vm326, %v450, 0.0
        %459 = vadd.xlane.f32.xlu0 %v458
        %v460 = vpop.xlane.xlu0 %459
        %v461 = vadd.f32 %v453, %v457
        %v462 = vadd.f32 %v454, %v460
        %463 = vst [vmem:[#allocation3] sm:$0xff] %v461
        %464 = vst [vmem:[#allocation3 + $0x8] sm:$0xff] %v462
        %v465 = vld [vmem:[#allocation4] sm:$0xff]
        %v466 = vld [vmem:[#allocation4 + $0x8] sm:$0xff]
        %468 = vset.pattern.permute.xlu0 0
        %469 = vperm.xlu0 %468, %v432
        %v470 = vpop.permute.xlu0 %469
        %473 = vset.pattern.permute.xlu0 0
        %474 = vperm.xlu0 %473, %v434
        %v475 = vpop.permute.xlu0 %474
        %v477 = vmul.f32 %v470, %v465
        %v478 = vmul.f32 %v475, %v466
        %v479 = vpack.c.bf16 %v448, %v448
        %v480 = vpack.c.bf16 %v450, %v450
        %v481 = vld [vmem:[%s293] sm:$0xf]
        %v482 = vld [vmem:[%s293 + $0x4] sm:$0xf]
        %v484 = vsel %vm326, %v479, 0
        %vm486 = vcmask 1043456
        %v488 = vsel %vm486, %v481, 0
        %490 = vmatprep.subr.bf16.mxu0 0
        %491 = vmatpush1.bf16.msra.mxu0 0
        %492 = vmatprep.subr.bf16.mxu0 0
        %493 = vmatpush1.bf16.msra.mxu0 0
        %494 = vmatprep.subr.bf16.mxu0 0
        %495 = vmatpush1.bf16.msra.mxu0 0
        %496 = vmatprep.subr.bf16.mxu0 0
        %497 = vmatpush1.bf16.msra.mxu0 0
        %498 = vmatprep.subr.bf16.mxu0 0
        %499 = vmatpush1.bf16.msra.mxu0 0
        %500 = vmatprep.subr.bf16.mxu0 0
        %501 = vmatpush1.bf16.msra.mxu0 0
        %502 = vmatprep.subr.bf16.mxu0 0
        %503 = vmatpush1.bf16.msra.mxu0 0
        %504 = vmatprep.subr.bf16.mxu0 0
        %505 = vmatpush1.bf16.msra.mxu0 %v488
        %506 = vmatprep.subr.bf16.mxu0 0
        %507 = vmatpush2.bf16.msra.mxu0 0
        %508 = vmatprep.subr.bf16.mxu0 0
        %509 = vmatpush2.bf16.msra.mxu0 0
        %510 = vmatprep.subr.bf16.mxu0 0
        %511 = vmatpush2.bf16.msra.mxu0 0
        %512 = vmatprep.subr.bf16.mxu0 0
        %513 = vmatpush2.bf16.msra.mxu0 0
        %514 = vmatprep.subr.bf16.mxu0 0
        %515 = vmatpush2.bf16.msra.mxu0 0
        %516 = vmatprep.subr.bf16.mxu0 0
        %517 = vmatpush2.bf16.msra.mxu0 0
        %518 = vmatprep.subr.bf16.mxu0 0
        %519 = vmatpush2.bf16.msra.mxu0 0
        %520 = vmatprep.subr.bf16.mxu0 0
        %521 = vmatpush2.bf16.msra.mxu0 0
        %522 = vmatprep.mubr.bf16.mxu0 0
        %523 = vmatmul.mubr.bf16.gmra.mxu0 %v484
        %v524 = vpop.f32.mrf.mxu0
        %v525 = vadd.f32 0.0, %v524
        %v526 = vpop.f32.mrf.mxu0
        %v527 = vpop.f32.mrf.mxu0
        %v528 = vpop.f32.mrf.mxu0
        %529 = vdwg.mxu0
        %v531 = vsel %vm326, %v480, 0
        %v534 = vsel %vm486, %v482, 0
        %536 = vmatprep.subr.bf16.mxu0 0
        %537 = vmatpush1.bf16.msra.mxu0 0
        %538 = vmatprep.subr.bf16.mxu0 0
        %539 = vmatpush1.bf16.msra.mxu0 0
        %540 = vmatprep.subr.bf16.mxu0 0
        %541 = vmatpush1.bf16.msra.mxu0 0
        %542 = vmatprep.subr.bf16.mxu0 0
        %543 = vmatpush1.bf16.msra.mxu0 0
        %544 = vmatprep.subr.bf16.mxu0 0
        %545 = vmatpush1.bf16.msra.mxu0 0
        %546 = vmatprep.subr.bf16.mxu0 0
        %547 = vmatpush1.bf16.msra.mxu0 0
        %548 = vmatprep.subr.bf16.mxu0 0
        %549 = vmatpush1.bf16.msra.mxu0 0
        %550 = vmatprep.subr.bf16.mxu0 0
        %551 = vmatpush1.bf16.msra.mxu0 %v534
        %552 = vmatprep.subr.bf16.mxu0 0
        %553 = vmatpush2.bf16.msra.mxu0 0
        %554 = vmatprep.subr.bf16.mxu0 0
        %555 = vmatpush2.bf16.msra.mxu0 0
        %556 = vmatprep.subr.bf16.mxu0 0
        %557 = vmatpush2.bf16.msra.mxu0 0
        %558 = vmatprep.subr.bf16.mxu0 0
        %559 = vmatpush2.bf16.msra.mxu0 0
        %560 = vmatprep.subr.bf16.mxu0 0
        %561 = vmatpush2.bf16.msra.mxu0 0
        %562 = vmatprep.subr.bf16.mxu0 0
        %563 = vmatpush2.bf16.msra.mxu0 0
        %564 = vmatprep.subr.bf16.mxu0 0
        %565 = vmatpush2.bf16.msra.mxu0 0
        %566 = vmatprep.subr.bf16.mxu0 0
        %567 = vmatpush2.bf16.msra.mxu0 0
        %568 = vmatprep.mubr.bf16.mxu0 0
        %569 = vmatmul.mubr.bf16.gmra.mxu0 %v531
        %v570 = vpop.f32.mrf.mxu0
        %v571 = vadd.f32 0.0, %v570
        %v572 = vpop.f32.mrf.mxu0
        %v573 = vpop.f32.mrf.mxu0
        %v574 = vpop.f32.mrf.mxu0
        %575 = vdwg.mxu0
        %v576 = vadd.f32 %v477, %v525
        %v577 = vadd.f32 %v478, %v571
        %578 = vst.msk [vmem:[#allocation4] sm:$0xff] %vm326, %v576
        %579 = vst.msk [vmem:[#allocation4 + $0x8] sm:$0xff] %vm326, %v577
        %580 = vst [vmem:[#allocation2] sm:$0xff] %v427
        %581 = vst [vmem:[#allocation2 + $0x8] sm:$0xff] %v428
      $region40: #{decode.13} parent=31 // pred_fallthru
        _
      %p582 = scmp.eq.s32.totalorder %s21, %s20
      // Predicated region
      $region41: #{decode.13} parent=31 // pred_check
        %p583 = pneg %p582
      $region42: #{decode.13} parent=31 // pred_check_branch
        %585 = sbr.rel (%p583) target = $region44
      $region43: #{decode.13} parent=31 // pred_region
        %v586 = vld [vmem:[%s269] sm:$0xf]
        %v587 = vld [vmem:[%s269 + $0x4] sm:$0xf]
        %v588 = vld [vmem:[%s280] sm:$0xf]
        %v589 = vld [vmem:[%s280 + $0x4] sm:$0xf]
        %vm590 = vcmask 64512
        %v592 = vsel %vm590, %v586, 0
        %v595 = vsel %vm590, %v588, 0
        %597 = vmatprep.subr.bf16.mxu0 0
        %598 = vmatpush1.bf16.xpose.msra.mxu0 0
        %599 = vmatprep.subr.bf16.mxu0 0
        %600 = vmatpush1.bf16.xpose.msra.mxu0 0
        %601 = vmatprep.subr.bf16.mxu0 0
        %602 = vmatpush1.bf16.xpose.msra.mxu0 0
        %603 = vmatprep.subr.bf16.mxu0 0
        %604 = vmatpush1.bf16.xpose.msra.mxu0 0
        %605 = vmatprep.subr.bf16.mxu0 0
        %606 = vmatpush1.bf16.xpose.msra.mxu0 0
        %607 = vmatprep.subr.bf16.mxu0 0
        %608 = vmatpush1.bf16.xpose.msra.mxu0 0
        %609 = vmatprep.subr.bf16.mxu0 0
        %610 = vmatpush1.bf16.xpose.msra.mxu0 0
        %611 = vmatprep.subr.bf16.mxu0 0
        %612 = vmatpush1.bf16.xpose.msra.mxu0 %v595
        %613 = vmatprep.subr.bf16.mxu0 0
        %614 = vmatpush2.bf16.xpose.msra.mxu0 0
        %615 = vmatprep.subr.bf16.mxu0 0
        %616 = vmatpush2.bf16.xpose.msra.mxu0 0
        %617 = vmatprep.subr.bf16.mxu0 0
        %618 = vmatpush2.bf16.xpose.msra.mxu0 0
        %619 = vmatprep.subr.bf16.mxu0 0
        %620 = vmatpush2.bf16.xpose.msra.mxu0 0
        %621 = vmatprep.subr.bf16.mxu0 0
        %622 = vmatpush2.bf16.xpose.msra.mxu0 0
        %623 = vmatprep.subr.bf16.mxu0 0
        %624 = vmatpush2.bf16.xpose.msra.mxu0 0
        %625 = vmatprep.subr.bf16.mxu0 0
        %626 = vmatpush2.bf16.xpose.msra.mxu0 0
        %627 = vmatprep.subr.bf16.mxu0 0
        %628 = vmatpush2.bf16.xpose.msra.mxu0 0
        %629 = vmatprep.mubr.bf16.mxu0 0
        %630 = vmatmul.mubr.bf16.gmra.mxu0 %v592
        %v631 = vpop.f32.mrf.mxu0
        %v632 = vadd.f32 0.0, %v631
        %v633 = vpop.f32.mrf.mxu0
        %v634 = vpop.f32.mrf.mxu0
        %v635 = vpop.f32.mrf.mxu0
        %636 = vdwg.mxu0
        %v638 = vsel %vm590, %v587, 0
        %v641 = vsel %vm590, %v589, 0
        %643 = vmatprep.subr.bf16.mxu0 0
        %644 = vmatpush1.bf16.xpose.msra.mxu0 0
        %645 = vmatprep.subr.bf16.mxu0 0
        %646 = vmatpush1.bf16.xpose.msra.mxu0 0
        %647 = vmatprep.subr.bf16.mxu0 0
        %648 = vmatpush1.bf16.xpose.msra.mxu0 0
        %649 = vmatprep.subr.bf16.mxu0 0
        %650 = vmatpush1.bf16.xpose.msra.mxu0 0
        %651 = vmatprep.subr.bf16.mxu0 0
        %652 = vmatpush1.bf16.xpose.msra.mxu0 0
        %653 = vmatprep.subr.bf16.mxu0 0
        %654 = vmatpush1.bf16.xpose.msra.mxu0 0
        %655 = vmatprep.subr.bf16.mxu0 0
        %656 = vmatpush1.bf16.xpose.msra.mxu0 0
        %657 = vmatprep.subr.bf16.mxu0 0
        %658 = vmatpush1.bf16.xpose.msra.mxu0 %v641
        %659 = vmatprep.subr.bf16.mxu0 0
        %660 = vmatpush2.bf16.xpose.msra.mxu0 0
        %661 = vmatprep.subr.bf16.mxu0 0
        %662 = vmatpush2.bf16.xpose.msra.mxu0 0
        %663 = vmatprep.subr.bf16.mxu0 0
        %664 = vmatpush2.bf16.xpose.msra.mxu0 0
        %665 = vmatprep.subr.bf16.mxu0 0
        %666 = vmatpush2.bf16.xpose.msra.mxu0 0
        %667 = vmatprep.subr.bf16.mxu0 0
        %668 = vmatpush2.bf16.xpose.msra.mxu0 0
        %669 = vmatprep.subr.bf16.mxu0 0
        %670 = vmatpush2.bf16.xpose.msra.mxu0 0
        %671 = vmatprep.subr.bf16.mxu0 0
        %672 = vmatpush2.bf16.xpose.msra.mxu0 0
        %673 = vmatprep.subr.bf16.mxu0 0
        %674 = vmatpush2.bf16.xpose.msra.mxu0 0
        %675 = vmatprep.mubr.bf16.mxu0 0
        %676 = vmatmul.mubr.bf16.gmra.mxu0 %v638
        %v677 = vpop.f32.mrf.mxu0
        %v678 = vadd.f32 0.0, %v677
        %v679 = vpop.f32.mrf.mxu0
        %v680 = vpop.f32.mrf.mxu0
        %v681 = vpop.f32.mrf.mxu0
        %682 = vdwg.mxu0
        %s683 = smul.u32 %s20, 8
        %v684 = vlaneseq
        %v685 = vshrl.u32 %v684, 7
        %v686 = vstv %s683
        %v687 = vadd.s32 %v686, %v685
        %s688 = smul.u32 %s21, 8
        %v689 = vlaneseq
        %v690 = vand.u32 %v689, 127
        %v691 = vstv %s688
        %v692 = vadd.s32 %v691, %v690
        %vm693 = vcmp.ge.s32.totalorder %v687, %v692
        %v694 = vsel %vm693, %v632, -1e+30
        %v695 = vsel %vm693, %v678, -1e+30
        %v696 = vld [vmem:[#allocation2] sm:$0xff]
        %v697 = vld [vmem:[#allocation2 + $0x8] sm:$0xff]
        %v698 = vsel %vm590, %v694, -inf
        %699 = vmax.xlane.f32.xlu0 %v698
        %v700 = vpop.xlane.xlu0 %699
        %v701 = vsel %vm590, %v695, -inf
        %702 = vmax.xlane.f32.xlu0 %v701
        %v703 = vpop.xlane.xlu0 %702
        %v704 = vmax.f32 %v696, %v700
        %v705 = vmax.f32 %v697, %v703
        %v706 = vsub.f32 %v696, %v704
        %v707 = vsub.f32 %v697, %v705
        %v708 = vmul.f32 %v706, 1.442695
        %v709 = vpow.pop %v708
        %v710 = vmul.f32 %v707, 1.442695
        %v711 = vpow.pop %v710
        %713 = vset.pattern.permute.xlu0 0
        %714 = vperm.xlu0 %713, %v704
        %v715 = vpop.permute.xlu0 %714
        %718 = vset.pattern.permute.xlu0 0
        %719 = vperm.xlu0 %718, %v705
        %v720 = vpop.permute.xlu0 %719
        %v722 = vsub.f32 %v694, %v715
        %v723 = vsub.f32 %v695, %v720
        %v724 = vmul.f32 %v722, 1.442695
        %v725 = vpow.pop %v724
        %v726 = vmul.f32 %v723, 1.442695
        %v727 = vpow.pop %v726
        %v728 = vld [vmem:[#allocation3] sm:$0xff]
        %v729 = vld [vmem:[#allocation3 + $0x8] sm:$0xff]
        %v730 = vmul.f32 %v709, %v728
        %v731 = vmul.f32 %v711, %v729
        %v732 = vsel %vm590, %v725, 0.0
        %733 = vadd.xlane.f32.xlu0 %v732
        %v734 = vpop.xlane.xlu0 %733
        %v735 = vsel %vm590, %v727, 0.0
        %736 = vadd.xlane.f32.xlu0 %v735
        %v737 = vpop.xlane.xlu0 %736
        %v738 = vadd.f32 %v730, %v734
        %v739 = vadd.f32 %v731, %v737
        %740 = vst [vmem:[#allocation3] sm:$0xff] %v738
        %741 = vst [vmem:[#allocation3 + $0x8] sm:$0xff] %v739
        %v742 = vld [vmem:[#allocation4] sm:$0xff]
        %v743 = vld [vmem:[#allocation4 + $0x8] sm:$0xff]
        %745 = vset.pattern.permute.xlu0 0
        %746 = vperm.xlu0 %745, %v709
        %v747 = vpop.permute.xlu0 %746
        %750 = vset.pattern.permute.xlu0 0
        %751 = vperm.xlu0 %750, %v711
        %v752 = vpop.permute.xlu0 %751
        %v754 = vmul.f32 %v747, %v742
        %v755 = vmul.f32 %v752, %v743
        %v756 = vpack.c.bf16 %v725, %v725
        %v757 = vpack.c.bf16 %v727, %v727
        %v758 = vld [vmem:[%s293] sm:$0xf]
        %v759 = vld [vmem:[%s293 + $0x4] sm:$0xf]
        %v761 = vsel %vm590, %v756, 0
        %vm763 = vcmask 1043456
        %v765 = vsel %vm763, %v758, 0
        %767 = vmatprep.subr.bf16.mxu0 0
        %768 = vmatpush1.bf16.msra.mxu0 0
        %769 = vmatprep.subr.bf16.mxu0 0
        %770 = vmatpush1.bf16.msra.mxu0 0
        %771 = vmatprep.subr.bf16.mxu0 0
        %772 = vmatpush1.bf16.msra.mxu0 0
        %773 = vmatprep.subr.bf16.mxu0 0
        %774 = vmatpush1.bf16.msra.mxu0 0
        %775 = vmatprep.subr.bf16.mxu0 0
        %776 = vmatpush1.bf16.msra.mxu0 0
        %777 = vmatprep.subr.bf16.mxu0 0
        %778 = vmatpush1.bf16.msra.mxu0 0
        %779 = vmatprep.subr.bf16.mxu0 0
        %780 = vmatpush1.bf16.msra.mxu0 0
        %781 = vmatprep.subr.bf16.mxu0 0
        %782 = vmatpush1.bf16.msra.mxu0 %v765
        %783 = vmatprep.subr.bf16.mxu0 0
        %784 = vmatpush2.bf16.msra.mxu0 0
        %785 = vmatprep.subr.bf16.mxu0 0
        %786 = vmatpush2.bf16.msra.mxu0 0
        %787 = vmatprep.subr.bf16.mxu0 0
        %788 = vmatpush2.bf16.msra.mxu0 0
        %789 = vmatprep.subr.bf16.mxu0 0
        %790 = vmatpush2.bf16.msra.mxu0 0
        %791 = vmatprep.subr.bf16.mxu0 0
        %792 = vmatpush2.bf16.msra.mxu0 0
        %793 = vmatprep.subr.bf16.mxu0 0
        %794 = vmatpush2.bf16.msra.mxu0 0
        %795 = vmatprep.subr.bf16.mxu0 0
        %796 = vmatpush2.bf16.msra.mxu0 0
        %797 = vmatprep.subr.bf16.mxu0 0
        %798 = vmatpush2.bf16.msra.mxu0 0
        %799 = vmatprep.mubr.bf16.mxu0 0
        %800 = vmatmul.mubr.bf16.gmra.mxu0 %v761
        %v801 = vpop.f32.mrf.mxu0
        %v802 = vadd.f32 0.0, %v801
        %v803 = vpop.f32.mrf.mxu0
        %v804 = vpop.f32.mrf.mxu0
        %v805 = vpop.f32.mrf.mxu0
        %806 = vdwg.mxu0
        %v808 = vsel %vm590, %v757, 0
        %v811 = vsel %vm763, %v759, 0
        %813 = vmatprep.subr.bf16.mxu0 0
        %814 = vmatpush1.bf16.msra.mxu0 0
        %815 = vmatprep.subr.bf16.mxu0 0
        %816 = vmatpush1.bf16.msra.mxu0 0
        %817 = vmatprep.subr.bf16.mxu0 0
        %818 = vmatpush1.bf16.msra.mxu0 0
        %819 = vmatprep.subr.bf16.mxu0 0
        %820 = vmatpush1.bf16.msra.mxu0 0
        %821 = vmatprep.subr.bf16.mxu0 0
        %822 = vmatpush1.bf16.msra.mxu0 0
        %823 = vmatprep.subr.bf16.mxu0 0
        %824 = vmatpush1.bf16.msra.mxu0 0
        %825 = vmatprep.subr.bf16.mxu0 0
        %826 = vmatpush1.bf16.msra.mxu0 0
        %827 = vmatprep.subr.bf16.mxu0 0
        %828 = vmatpush1.bf16.msra.mxu0 %v811
        %829 = vmatprep.subr.bf16.mxu0 0
        %830 = vmatpush2.bf16.msra.mxu0 0
        %831 = vmatprep.subr.bf16.mxu0 0
        %832 = vmatpush2.bf16.msra.mxu0 0
        %833 = vmatprep.subr.bf16.mxu0 0
        %834 = vmatpush2.bf16.msra.mxu0 0
        %835 = vmatprep.subr.bf16.mxu0 0
        %836 = vmatpush2.bf16.msra.mxu0 0
        %837 = vmatprep.subr.bf16.mxu0 0
        %838 = vmatpush2.bf16.msra.mxu0 0
        %839 = vmatprep.subr.bf16.mxu0 0
        %840 = vmatpush2.bf16.msra.mxu0 0
        %841 = vmatprep.subr.bf16.mxu0 0
        %842 = vmatpush2.bf16.msra.mxu0 0
        %843 = vmatprep.subr.bf16.mxu0 0
        %844 = vmatpush2.bf16.msra.mxu0 0
        %845 = vmatprep.mubr.bf16.mxu0 0
        %846 = vmatmul.mubr.bf16.gmra.mxu0 %v808
        %v847 = vpop.f32.mrf.mxu0
        %v848 = vadd.f32 0.0, %v847
        %v849 = vpop.f32.mrf.mxu0
        %v850 = vpop.f32.mrf.mxu0
        %v851 = vpop.f32.mrf.mxu0
        %852 = vdwg.mxu0
        %v853 = vadd.f32 %v754, %v802
        %v854 = vadd.f32 %v755, %v848
        %855 = vst.msk [vmem:[#allocation4] sm:$0xff] %vm590, %v853
        %856 = vst.msk [vmem:[#allocation4 + $0x8] sm:$0xff] %vm590, %v854
        %857 = vst [vmem:[#allocation2] sm:$0xff] %v704
        %858 = vst [vmem:[#allocation2 + $0x8] sm:$0xff] %v705
      $region44: #{decode.13} parent=31 // pred_fallthru
        _
      // Predicated region
      $region45: #{decode.13} parent=31 // pred_check
        %p859 = pneg %p307
      $region46: #{decode.13} parent=31 // pred_check_branch
        %861 = sbr.rel (%p859) target = $region48
      $region47: #{decode.13} parent=31 // pred_region
        %v862 = vld [vmem:[#allocation3] sm:$0xff]
        %v863 = vld [vmem:[#allocation3 + $0x8] sm:$0xff]
        %v864 = vrcp.pop %v862
        %v865 = vrcp.pop %v863
        %v866 = vld [vmem:[#allocation4] sm:$0xff]
        %v867 = vld [vmem:[#allocation4 + $0x8] sm:$0xff]
        %869 = vset.pattern.permute.xlu0 0
        %870 = vperm.xlu0 %869, %v864
        %v871 = vpop.permute.xlu0 %870
        %874 = vset.pattern.permute.xlu0 0
        %875 = vperm.xlu0 %874, %v865
        %v876 = vpop.permute.xlu0 %875
        %v878 = vmul.f32 %v866, %v871
        %v879 = vmul.f32 %v867, %v876
        %v880 = vpack.c.bf16 %v878, %v878
        %v881 = vpack.c.bf16 %v879, %v879
        %vm882 = vcmask 60416
        %883 = vst.msk [vmem:[%s304] sm:$0xf] %vm882, %v880
        %884 = vst.msk [vmem:[%s304 + $0x4] sm:$0xf] %vm882, %v881
      $region48: #{decode.13} parent=31 // pred_fallthru
        _
      %s885 = smul.u32 2, %s19
      %p886 = scmp.lt.s32.totalorder %s885, 7
      %s887 = scalar_select %p886, %s885, 7
      %p888 = scmp.lt.s32.totalorder %s20, 0
      %s889 = scalar_select %p888, %s20, 0
      %s890 = sadd.s32 %s889, %s887
      %s891 = smul.addr %s890, 4
      %s892 = scalar_lea.vmem %s3, %s891
      // Predicated region
      $region49: #{decode.13} parent=31 // pred_check
        %p893 = pneg %p145
      $region50: #{decode.13} parent=31 // pred_check_branch
        %895 = sbr.rel (%p893) target = $region52
      $region51: #{decode.13} parent=31 // pred_region
        %s896 = smul.u32 2, %s19
      $region52: #{decode.13} parent=31 // pred_fallthru
        _
    $region32: #{decode.13} parent=5 // pred_fallthru
      _
    %p897 = scmp.le.s32.totalorder 2, %s9
    // Predicated region
    $region53: #{decode.13} parent=5 // pred_check
      %p898 = pneg %p897
    $region54: #{decode.13} parent=5 // pred_check_branch
      %900 = sbr.rel (%p898) target = $region56
    $region55: #{decode.13} parent=5 // pred_region
      %s901 = ssub.s32 %s9, 2
      // Predicated region
      $region57: #{decode.13} parent=55 // pred_check
        %p902 = pneg %p151
      $region58: #{decode.13} parent=55 // pred_check_branch
        %904 = sbr.rel (%p902) target = $region60
      $region59: #{decode.13} parent=55 // pred_region
        %s905 = smul.u32 2, %s22
        %p906 = scmp.lt.s32.totalorder %s905, 7
        %s907 = scalar_select %p906, %s905, 7
        %p908 = scmp.lt.s32.totalorder %s23, 0
        %s909 = scalar_select %p908, %s23, 0
        %s910 = sadd.s32 %s909, %s907
        %s911 = smul.addr %s910, 4
        %s912 = scalar_lea.vmem %s3, %s911
      $region60: #{decode.13} parent=55 // pred_fallthru
        _
    $region56: #{decode.13} parent=5 // pred_fallthru
      _
  $region6: #{decode.13} parent=0 // loop_footer
    %s13 = sadd.s32 1, %s9
  $region7: #{decode.13} parent=0 // loop_footer_branch
    %8 = sbr.rel target = $region3
  $region8: #{decode.13} parent=0 // loop_exit
    _

// kernel: decode.14
$region0: #{decode.14}
  #allocation0 [shape = 'u32[]', space=smem, size = 0x4, offset = 0x4, fixed_abs, tag = 'smem constant byte address 0x4 - core index']
  #allocation1 [shape = 'u32[144,128]{1,0:T(1,128)}', space=vmem, size = 0x12000, scoped, tag = 'internal scratch']
  #allocation2 [shape = 'f32[16,32]{1,0:T(8,128)}', space=vmem, size = 0x2000, scoped, tag = 'scratch operand']
  %s0 = inlined_call_operand.vmem [shape: bf16[16,32], index: 0, kind: input, shape index: {}]
  %s1 = inlined_call_operand.vmem [shape: bf16[32,32], index: 1, kind: input, shape index: {}]
  %s2 = inlined_call_operand.vmem [shape: f32[1,32], index: 2, kind: input, shape index: {}]
  %s3 = inlined_call_operand.vmem [shape: bf16[16,32], index: 3, kind: input, shape index: {}]
  %s4 = inlined_call_operand.vmem [shape: bf16[16,32], index: 4, kind: output, shape index: {}]
  %s5 = sld [smem:[#allocation0]]
  $region34: #{decode.14} parent=0
    _
  %s7 = ssub.s32 1, %s5
  %s8 = scalar_select 0, %s7, %s5
  // Predicated region
  $region2: #{decode.14} parent=0 // pred_check
    _
  $region3: #{decode.14} parent=0 // pred_check_branch
    %10 = sbr.rel (0) target = $region5
  $region4: #{decode.14} parent=0 // pred_region
    _
  $region5: #{decode.14} parent=0 // pred_fallthru
    _
  // Predicated region
  $region6: #{decode.14} parent=0 // pred_check
    _
  $region7: #{decode.14} parent=0 // pred_check_branch
    %12 = sbr.rel (0) target = $region9
  $region8: #{decode.14} parent=0 // pred_region
    _
  $region9: #{decode.14} parent=0 // pred_fallthru
    _
  // Predicated region
  $region10: #{decode.14} parent=0 // pred_check
    _
  $region11: #{decode.14} parent=0 // pred_check_branch
    %14 = sbr.rel (0) target = $region13
  $region12: #{decode.14} parent=0 // pred_region
    _
  $region13: #{decode.14} parent=0 // pred_fallthru
    _
  // Predicated region
  $region14: #{decode.14} parent=0 // pred_check
    _
  $region15: #{decode.14} parent=0 // pred_check_branch
    %16 = sbr.rel (0) target = $region17
  $region16: #{decode.14} parent=0 // pred_region
    _
  $region17: #{decode.14} parent=0 // pred_fallthru
    _
  %p18 = scmp.eq.s32.totalorder 0, 0
  // Predicated region
  $region18: #{decode.14} parent=0 // pred_check
    %p19 = pneg %p18
  $region19: #{decode.14} parent=0 // pred_check_branch
    %21 = sbr.rel (%p19) target = $region21
  $region20: #{decode.14} parent=0 // pred_region
    %v22 = vld [vmem:[%s3] sm:$0xf]
    %v23 = vld [vmem:[%s3 + $0x4] sm:$0xf]
    %v24 = vunpack.c.l.bf16 %v22
    %v25 = vunpack.c.l.bf16 %v23
    %v26 = vld [vmem:[%s2] sm:$0x1]
    %v28 = vlaneseq
    %v29 = vshrl.u32 %v28, 7
    %v30 = vsub.s32 0, %v29
    %v31 = vrot.slane %v26, %v30
    %v33 = vadd.f32 %v24, %v31
    %v34 = vadd.f32 %v25, %v31
    %vm35 = vcmask 261120
    %36 = vst.msk [vmem:[#allocation2] sm:$0xff] %vm35, %v33
    %37 = vst.msk [vmem:[#allocation2 + $0x8] sm:$0xff] %vm35, %v34
  $region21: #{decode.14} parent=0 // pred_fallthru
    _
  %v38 = vld [vmem:[#allocation2] sm:$0xff]
  %v39 = vld [vmem:[#allocation2 + $0x8] sm:$0xff]
  %v40 = vld [vmem:[%s0] sm:$0xf]
  %v41 = vld [vmem:[%s0 + $0x4] sm:$0xf]
  %v42 = vld [vmem:[%s1] sm:$0xf]
  %v43 = vld [vmem:[%s1 + $0x4] sm:$0xf]
  %v44 = vld [vmem:[%s1 + $0x8] sm:$0xf]
  %v45 = vld [vmem:[%s1 + $0xc] sm:$0xf]
  %v48 = vunpack.c.l.b16 %v40
  %v49 = vunpack.c.l.b16 %v41
  %v50 = vpack.c.b16 %v49, %v48
  %v55 = vunpack.c.l.b16 %v42
  %v56 = vunpack.c.l.b16 %v43
  %v57 = vunpack.c.l.b16 %v44
  %v58 = vunpack.c.l.b16 %v45
  %v59 = vpack.c.b16 %v56, %v55
  %v60 = vpack.c.b16 %v58, %v57
  %vm63 = vcmask 261120
  %v65 = vsel %vm63, %v50, 0
  %67 = vmatprep.subr.bf16.mxu0 0
  %68 = vmatpush1.bf16.msra.mxu0 0
  %69 = vmatprep.subr.bf16.mxu0 0
  %70 = vmatpush1.bf16.msra.mxu0 0
  %71 = vmatprep.subr.bf16.mxu0 0
  %72 = vmatpush1.bf16.msra.mxu0 0
  %73 = vmatprep.subr.bf16.mxu0 0
  %74 = vmatpush1.bf16.msra.mxu0 0
  %75 = vmatprep.subr.bf16.mxu0 0
  %76 = vmatpush1.bf16.msra.mxu0 0
  %77 = vmatprep.subr.bf16.mxu0 0
  %78 = vmatpush1.bf16.msra.mxu0 0
  %79 = vmatprep.subr.bf16.mxu0 0
  %80 = vmatpush1.bf16.msra.mxu0 %v60
  %81 = vmatprep.subr.bf16.mxu0 0
  %82 = vmatpush1.bf16.msra.mxu0 %v59
  %83 = vmatprep.subr.bf16.mxu0 0
  %84 = vmatpush2.bf16.msra.mxu0 0
  %85 = vmatprep.subr.bf16.mxu0 0
  %86 = vmatpush2.bf16.msra.mxu0 0
  %87 = vmatprep.subr.bf16.mxu0 0
  %88 = vmatpush2.bf16.msra.mxu0 0
  %89 = vmatprep.subr.bf16.mxu0 0
  %90 = vmatpush2.bf16.msra.mxu0 0
  %91 = vmatprep.subr.bf16.mxu0 0
  %92 = vmatpush2.bf16.msra.mxu0 0
  %93 = vmatprep.subr.bf16.mxu0 0
  %94 = vmatpush2.bf16.msra.mxu0 0
  %95 = vmatprep.subr.bf16.mxu0 0
  %96 = vmatpush2.bf16.msra.mxu0 0
  %97 = vmatprep.subr.bf16.mxu0 0
  %98 = vmatpush2.bf16.msra.mxu0 0
  %99 = vmatprep.mubr.bf16.mxu0 0
  %100 = vmatmul.mubr.bf16.gmra.mxu0 %v65
  %v101 = vpop.f32.mrf.mxu0
  %v102 = vadd.f32 0.0, %v101
  %v103 = vpop.f32.mrf.mxu0
  %v104 = vpop.f32.mrf.mxu0
  %v105 = vadd.f32 0.0, %v104
  %v106 = vpop.f32.mrf.mxu0
  %107 = vdwg.mxu0
  %v108 = vadd.f32 %v38, %v102
  %v109 = vadd.f32 %v39, %v105
  %110 = vst.msk [vmem:[#allocation2] sm:$0xff] %vm63, %v108
  %111 = vst.msk [vmem:[#allocation2 + $0x8] sm:$0xff] %vm63, %v109
  // Predicated region
  $region22: #{decode.14} parent=0 // pred_check
    %p112 = pneg %p18
  $region23: #{decode.14} parent=0 // pred_check_branch
    %114 = sbr.rel (%p112) target = $region25
  $region24: #{decode.14} parent=0 // pred_region
    %v115 = vld [vmem:[#allocation2] sm:$0xff]
    %v116 = vld [vmem:[#allocation2 + $0x8] sm:$0xff]
    %v117 = vpack.c.bf16 %v116, %v115
    %v119 = vunpack.c.l.b16 %v117
    %v120 = vunpack.c.h.b16 %v117
    %v121 = vpack.c.b16 %v119, %v119
    %v122 = vpack.c.b16 %v120, %v120
    %vm125 = vcmask 257024
    %126 = vst.msk [vmem:[%s4] sm:$0xf] %vm125, %v121
    %127 = vst.msk [vmem:[%s4 + $0x4] sm:$0xf] %vm125, %v122
  $region25: #{decode.14} parent=0 // pred_fallthru
    _
  // Predicated region
  $region26: #{decode.14} parent=0 // pred_check
    _
  $region27: #{decode.14} parent=0 // pred_check_branch
    %129 = sbr.rel (0) target = $region29
  $region28: #{decode.14} parent=0 // pred_region
    _
  $region29: #{decode.14} parent=0 // pred_fallthru
    _
  // Predicated region
  $region30: #{decode.14} parent=0 // pred_check
    _
  $region31: #{decode.14} parent=0 // pred_check_branch
    %131 = sbr.rel (0) target = $region33
  $region32: #{decode.14} parent=0 // pred_region
    _
  $region33: #{decode.14} parent=0 // pred_fallthru
    _

// kernel: decode.16
$region0: #{decode.16}
  #allocation0 [shape = 'u32[]', space=smem, size = 0x4, offset = 0x4, fixed_abs, tag = 'smem constant byte address 0x4 - core index']
  #allocation1 [shape = 'u32[144,128]{1,0:T(1,128)}', space=vmem, size = 0x12000, scoped, tag = 'internal scratch']
  #allocation2 [shape = 'f32[16,32]{1,0:T(8,128)}', space=vmem, size = 0x2000, scoped, tag = 'scratch operand']
  %s0 = inlined_call_operand.vmem [shape: bf16[16,128], index: 0, kind: input, shape index: {}]
  %s1 = inlined_call_operand.vmem [shape: bf16[128,32], index: 1, kind: input, shape index: {}]
  %s2 = inlined_call_operand.vmem [shape: f32[1,32], index: 2, kind: input, shape index: {}]
  %s3 = inlined_call_operand.vmem [shape: bf16[16,32], index: 3, kind: input, shape index: {}]
  %s4 = inlined_call_operand.vmem [shape: bf16[16,32], index: 4, kind: output, shape index: {}]
  %s5 = sld [smem:[#allocation0]]
  $region34: #{decode.16} parent=0
    _
  %s7 = ssub.s32 1, %s5
  %s8 = scalar_select 0, %s7, %s5
  // Predicated region
  $region2: #{decode.16} parent=0 // pred_check
    _
  $region3: #{decode.16} parent=0 // pred_check_branch
    %10 = sbr.rel (0) target = $region5
  $region4: #{decode.16} parent=0 // pred_region
    _
  $region5: #{decode.16} parent=0 // pred_fallthru
    _
  // Predicated region
  $region6: #{decode.16} parent=0 // pred_check
    _
  $region7: #{decode.16} parent=0 // pred_check_branch
    %12 = sbr.rel (0) target = $region9
  $region8: #{decode.16} parent=0 // pred_region
    _
  $region9: #{decode.16} parent=0 // pred_fallthru
    _
  // Predicated region
  $region10: #{decode.16} parent=0 // pred_check
    _
  $region11: #{decode.16} parent=0 // pred_check_branch
    %14 = sbr.rel (0) target = $region13
  $region12: #{decode.16} parent=0 // pred_region
    _
  $region13: #{decode.16} parent=0 // pred_fallthru
    _
  // Predicated region
  $region14: #{decode.16} parent=0 // pred_check
    _
  $region15: #{decode.16} parent=0 // pred_check_branch
    %16 = sbr.rel (0) target = $region17
  $region16: #{decode.16} parent=0 // pred_region
    _
  $region17: #{decode.16} parent=0 // pred_fallthru
    _
  %p18 = scmp.eq.s32.totalorder 0, 0
  // Predicated region
  $region18: #{decode.16} parent=0 // pred_check
    %p19 = pneg %p18
  $region19: #{decode.16} parent=0 // pred_check_branch
    %21 = sbr.rel (%p19) target = $region21
  $region20: #{decode.16} parent=0 // pred_region
    %v22 = vld [vmem:[%s3] sm:$0xf]
    %v23 = vld [vmem:[%s3 + $0x4] sm:$0xf]
    %v24 = vunpack.c.l.bf16 %v22
    %v25 = vunpack.c.l.bf16 %v23
    %v26 = vld [vmem:[%s2] sm:$0x1]
    %v28 = vlaneseq
    %v29 = vshrl.u32 %v28, 7
    %v30 = vsub.s32 0, %v29
    %v31 = vrot.slane %v26, %v30
    %v33 = vadd.f32 %v24, %v31
    %v34 = vadd.f32 %v25, %v31
    %vm35 = vcmask 261120
    %36 = vst.msk [vmem:[#allocation2] sm:$0xff] %vm35, %v33
    %37 = vst.msk [vmem:[#allocation2 + $0x8] sm:$0xff] %vm35, %v34
  $region21: #{decode.16} parent=0 // pred_fallthru
    _
  %v38 = vld [vmem:[#allocation2] sm:$0xff]
  %v39 = vld [vmem:[#allocation2 + $0x8] sm:$0xff]
  %v40 = vld [vmem:[%s0] sm:$0xf]
  %v41 = vld [vmem:[%s0 + $0x4] sm:$0xf]
  %v42 = vld [vmem:[%s1] sm:$0xf]
  %v43 = vld [vmem:[%s1 + $0x4] sm:$0xf]
  %v44 = vld [vmem:[%s1 + $0x8] sm:$0xf]
  %v45 = vld [vmem:[%s1 + $0xc] sm:$0xf]
  %v46 = vld [vmem:[%s1 + $0x10] sm:$0xf]
  %v47 = vld [vmem:[%s1 + $0x14] sm:$0xf]
  %v48 = vld [vmem:[%s1 + $0x18] sm:$0xf]
  %v49 = vld [vmem:[%s1 + $0x1c] sm:$0xf]
  %v50 = vld [vmem:[%s1 + $0x20] sm:$0xf]
  %v51 = vld [vmem:[%s1 + $0x24] sm:$0xf]
  %v52 = vld [vmem:[%s1 + $0x28] sm:$0xf]
  %v53 = vld [vmem:[%s1 + $0x2c] sm:$0xf]
  %v54 = vld [vmem:[%s1 + $0x30] sm:$0xf]
  %v55 = vld [vmem:[%s1 + $0x34] sm:$0xf]
  %v56 = vld [vmem:[%s1 + $0x38] sm:$0xf]
  %v57 = vld [vmem:[%s1 + $0x3c] sm:$0xf]
  %v60 = vunpack.c.l.b16 %v40
  %v61 = vunpack.c.l.b16 %v41
  %v62 = vpack.c.b16 %v61, %v60
  %v80 = vunpack.c.l.b16 %v42
  %v81 = vunpack.c.l.b16 %v43
  %v82 = vunpack.c.l.b16 %v44
  %v83 = vunpack.c.l.b16 %v45
  %v84 = vunpack.c.l.b16 %v46
  %v85 = vunpack.c.l.b16 %v47
  %v86 = vunpack.c.l.b16 %v48
  %v87 = vunpack.c.l.b16 %v49
  %v88 = vunpack.c.l.b16 %v50
  %v89 = vunpack.c.l.b16 %v51
  %v90 = vunpack.c.l.b16 %v52
  %v91 = vunpack.c.l.b16 %v53
  %v92 = vunpack.c.l.b16 %v54
  %v93 = vunpack.c.l.b16 %v55
  %v94 = vunpack.c.l.b16 %v56
  %v95 = vunpack.c.l.b16 %v57
  %v96 = vpack.c.b16 %v81, %v80
  %v97 = vpack.c.b16 %v83, %v82
  %v98 = vpack.c.b16 %v85, %v84
  %v99 = vpack.c.b16 %v87, %v86
  %v100 = vpack.c.b16 %v89, %v88
  %v101 = vpack.c.b16 %v91, %v90
  %v102 = vpack.c.b16 %v93, %v92
  %v103 = vpack.c.b16 %v95, %v94
  %112 = vmatprep.subr.bf16.mxu0 0
  %113 = vmatpush1.bf16.msra.mxu0 %v103
  %114 = vmatprep.subr.bf16.mxu0 0
  %115 = vmatpush1.bf16.msra.mxu0 %v102
  %116 = vmatprep.subr.bf16.mxu0 0
  %117 = vmatpush1.bf16.msra.mxu0 %v101
  %118 = vmatprep.subr.bf16.mxu0 0
  %119 = vmatpush1.bf16.msra.mxu0 %v100
  %120 = vmatprep.subr.bf16.mxu0 0
  %121 = vmatpush1.bf16.msra.mxu0 %v99
  %122 = vmatprep.subr.bf16.mxu0 0
  %123 = vmatpush1.bf16.msra.mxu0 %v98
  %124 = vmatprep.subr.bf16.mxu0 0
  %125 = vmatpush1.bf16.msra.mxu0 %v97
  %126 = vmatprep.subr.bf16.mxu0 0
  %127 = vmatpush1.bf16.msra.mxu0 %v96
  %128 = vmatprep.subr.bf16.mxu0 0
  %129 = vmatpush2.bf16.msra.mxu0 0
  %130 = vmatprep.subr.bf16.mxu0 0
  %131 = vmatpush2.bf16.msra.mxu0 0
  %132 = vmatprep.subr.bf16.mxu0 0
  %133 = vmatpush2.bf16.msra.mxu0 0
  %134 = vmatprep.subr.bf16.mxu0 0
  %135 = vmatpush2.bf16.msra.mxu0 0
  %136 = vmatprep.subr.bf16.mxu0 0
  %137 = vmatpush2.bf16.msra.mxu0 0
  %138 = vmatprep.subr.bf16.mxu0 0
  %139 = vmatpush2.bf16.msra.mxu0 0
  %140 = vmatprep.subr.bf16.mxu0 0
  %141 = vmatpush2.bf16.msra.mxu0 0
  %142 = vmatprep.subr.bf16.mxu0 0
  %143 = vmatpush2.bf16.msra.mxu0 0
  %144 = vmatprep.mubr.bf16.mxu0 0
  %145 = vmatmul.mubr.bf16.gmra.mxu0 %v62
  %v146 = vpop.f32.mrf.mxu0
  %v147 = vadd.f32 0.0, %v146
  %v148 = vpop.f32.mrf.mxu0
  %v149 = vpop.f32.mrf.mxu0
  %v150 = vadd.f32 0.0, %v149
  %v151 = vpop.f32.mrf.mxu0
  %152 = vdwg.mxu0
  %v153 = vadd.f32 %v38, %v147
  %v154 = vadd.f32 %v39, %v150
  %vm155 = vcmask 261120
  %156 = vst.msk [vmem:[#allocation2] sm:$0xff] %vm155, %v153
  %157 = vst.msk [vmem:[#allocation2 + $0x8] sm:$0xff] %vm155, %v154
  // Predicated region
  $region22: #{decode.16} parent=0 // pred_check
    %p158 = pneg %p18
  $region23: #{decode.16} parent=0 // pred_check_branch
    %160 = sbr.rel (%p158) target = $region25
  $region24: #{decode.16} parent=0 // pred_region
    %v161 = vld [vmem:[#allocation2] sm:$0xff]
    %v162 = vld [vmem:[#allocation2 + $0x8] sm:$0xff]
    %v163 = vpack.c.bf16 %v162, %v161
    %v165 = vunpack.c.l.b16 %v163
    %v166 = vunpack.c.h.b16 %v163
    %v167 = vpack.c.b16 %v165, %v165
    %v168 = vpack.c.b16 %v166, %v166
    %vm171 = vcmask 257024
    %172 = vst.msk [vmem:[%s4] sm:$0xf] %vm171, %v167
    %173 = vst.msk [vmem:[%s4 + $0x4] sm:$0xf] %vm171, %v168
  $region25: #{decode.16} parent=0 // pred_fallthru
    _
  // Predicated region
  $region26: #{decode.16} parent=0 // pred_check
    _
  $region27: #{decode.16} parent=0 // pred_check_branch
    %175 = sbr.rel (0) target = $region29
  $region28: #{decode.16} parent=0 // pred_region
    _
  $region29: #{decode.16} parent=0 // pred_fallthru
    _
  // Predicated region
  $region30: #{decode.16} parent=0 // pred_check
    _
  $region31: #{decode.16} parent=0 // pred_check_branch
    %177 = sbr.rel (0) target = $region33
  $region32: #{decode.16} parent=0 // pred_region
    _
  $region33: #{decode.16} parent=0 // pred_fallthru
    _

// kernel: decode.22
$region0: #{decode.22}
  #allocation0 [shape = 'u32[]', space=smem, size = 0x4, offset = 0x4, fixed_abs, tag = 'smem constant byte address 0x4 - core index']
  #allocation1 [shape = 'u32[144,128]{1,0:T(1,128)}', space=vmem, size = 0x12000, scoped, tag = 'internal scratch']
  %s0 = inlined_call_operand.vmem [shape: bf16[16,32], index: 0, kind: input, shape index: {}]
  %s1 = inlined_call_operand.vmem [shape: f32[1,32], index: 1, kind: input, shape index: {}]
  %s2 = inlined_call_operand.vmem [shape: f32[1,32], index: 2, kind: input, shape index: {}]
  %s3 = inlined_call_operand.vmem [shape: bf16[16,32], index: 3, kind: output, shape index: {}]
  %s4 = sld [smem:[#allocation0]]
  $region22: #{decode.22} parent=0
    _
  %s6 = ssub.s32 1, %s4
  %s7 = scalar_select 0, %s6, %s4
  // Predicated region
  $region2: #{decode.22} parent=0 // pred_check
    _
  $region3: #{decode.22} parent=0 // pred_check_branch
    %9 = sbr.rel (0) target = $region5
  $region4: #{decode.22} parent=0 // pred_region
    _
  $region5: #{decode.22} parent=0 // pred_fallthru
    _
  // Predicated region
  $region6: #{decode.22} parent=0 // pred_check
    _
  $region7: #{decode.22} parent=0 // pred_check_branch
    %11 = sbr.rel (0) target = $region9
  $region8: #{decode.22} parent=0 // pred_region
    _
  $region9: #{decode.22} parent=0 // pred_fallthru
    _
  // Predicated region
  $region10: #{decode.22} parent=0 // pred_check
    _
  $region11: #{decode.22} parent=0 // pred_check_branch
    %13 = sbr.rel (0) target = $region13
  $region12: #{decode.22} parent=0 // pred_region
    _
  $region13: #{decode.22} parent=0 // pred_fallthru
    _
  %v14 = vld [vmem:[%s0] sm:$0xf]
  %v15 = vld [vmem:[%s0 + $0x4] sm:$0xf]
  %v16 = vunpack.c.l.bf16 %v14
  %v17 = vunpack.c.l.bf16 %v15
  %vm18 = vcmask 261120
  %v19 = vsel %vm18, %v16, 0.0
  %20 = vadd.xlane.f32.xlu0 %v19
  %v21 = vpop.xlane.xlu0 %20
  %v22 = vsel %vm18, %v17, 0.0
  %23 = vadd.xlane.f32.xlu0 %v22
  %v24 = vpop.xlane.xlu0 %23
  %v25 = vrcp.pop 32.0
  %v26 = vmul.f32 %v21, %v25
  %v27 = vmul.f32 %v24, %v25
  %v28 = vsub.f32 %v16, %v26
  %v29 = vsub.f32 %v17, %v27
  %v30 = vmul.f32 %v28, %v28
  %v31 = vmul.f32 %v29, %v29
  %v32 = vsel %vm18, %v30, 0.0
  %33 = vadd.xlane.f32.xlu0 %v32
  %v34 = vpop.xlane.xlu0 %33
  %v35 = vsel %vm18, %v31, 0.0
  %36 = vadd.xlane.f32.xlu0 %v35
  %v37 = vpop.xlane.xlu0 %36
  %v38 = vmul.f32 %v34, %v25
  %v39 = vmul.f32 %v37, %v25
  %v40 = vadd.f32 %v38, 1e-05
  %v41 = vadd.f32 %v39, 1e-05
  %v42 = vrsqrt.pop %v40
  %v43 = vrsqrt.pop %v41
  %v44 = vmul.f32 %v28, %v42
  %v45 = vmul.f32 %v29, %v43
  %v46 = vld [vmem:[%s1] sm:$0x1]
  %v48 = vlaneseq
  %v49 = vshrl.u32 %v48, 7
  %v50 = vsub.s32 0, %v49
  %v51 = vrot.slane %v46, %v50
  %v53 = vmul.f32 %v44, %v51
  %v54 = vmul.f32 %v45, %v51
  %v55 = vld [vmem:[%s2] sm:$0x1]
  %v57 = vlaneseq
  %v58 = vshrl.u32 %v57, 7
  %v59 = vsub.s32 0, %v58
  %v60 = vrot.slane %v55, %v59
  %v62 = vadd.f32 %v53, %v60
  %v63 = vadd.f32 %v54, %v60
  %v64 = vpack.c.bf16 %v63, %v62
  %v66 = vunpack.c.l.b16 %v64
  %v67 = vunpack.c.h.b16 %v64
  %v68 = vpack.c.b16 %v66, %v66
  %v69 = vpack.c.b16 %v67, %v67
  %vm72 = vcmask 257024
  %73 = vst.msk [vmem:[%s3] sm:$0xf] %vm72, %v68
  %74 = vst.msk [vmem:[%s3 + $0x4] sm:$0xf] %vm72, %v69
  // Predicated region
  $region14: #{decode.22} parent=0 // pred_check
    _
  $region15: #{decode.22} parent=0 // pred_check_branch
    %76 = sbr.rel (0) target = $region17
  $region16: #{decode.22} parent=0 // pred_region
    _
  $region17: #{decode.22} parent=0 // pred_fallthru
    _
  // Predicated region
  $region18: #{decode.22} parent=0 // pred_check
    _
  $region19: #{decode.22} parent=0 // pred_check_branch
    %78 = sbr.rel (0) target = $region21
  $region20: #{decode.22} parent=0 // pred_region
    _
  $region21: #{decode.22} parent=0 // pred_fallthru
    _

// kernel: decode.23
$region0: #{decode.23}
  #allocation0 [shape = 'u32[]', space=smem, size = 0x4, offset = 0x4, fixed_abs, tag = 'smem constant byte address 0x4 - core index']
  #allocation1 [shape = 'u32[144,128]{1,0:T(1,128)}', space=vmem, size = 0x12000, scoped, tag = 'internal scratch']
  %s0 = inlined_call_operand.vmem [shape: bf16[16,32], index: 0, kind: input, shape index: {}]
  %s1 = inlined_call_operand.vmem [shape: bf16[32,64], index: 1, kind: input, shape index: {}]
  %s2 = inlined_call_operand.hbm [shape: f32[16,64], index: 2, kind: output, shape index: {}]
  %s3 = sld [smem:[#allocation0]]
  $region18: #{decode.23} parent=0
    _
  %s5 = ssub.s32 1, %s3
  %s6 = scalar_select 0, %s5, %s3
  $region1: #{decode.23} parent=0
    #allocation2 [shape = 'u8[8192]{0}', space=vmem, size = 0x2000, scoped, tag = 'output window, operand 0, single buffered']
    #allocation3 [shape = 's32[1]{0}', space=sflag, size = 0x4, scoped, tag = 'scoped memory for decode.23']
    %7 = vsyncpa [#allocation3], 0
    // Predicated region
    $region2: #{decode.23} parent=1 // pred_check
      _
    $region3: #{decode.23} parent=1 // pred_check_branch
      %9 = sbr.rel (0) target = $region5
    $region4: #{decode.23} parent=1 // pred_region
      _
    $region5: #{decode.23} parent=1 // pred_fallthru
      _
    // Predicated region
    $region6: #{decode.23} parent=1 // pred_check
      _
    $region7: #{decode.23} parent=1 // pred_check_branch
      %11 = sbr.rel (0) target = $region9
    $region8: #{decode.23} parent=1 // pred_region
      _
    $region9: #{decode.23} parent=1 // pred_fallthru
      _
    %v13 = vld [vmem:[%s0] sm:$0xf]
    %v14 = vld [vmem:[%s0 + $0x4] sm:$0xf]
    %v15 = vld [vmem:[%s1] sm:$0xf]
    %v16 = vld [vmem:[%s1 + $0x4] sm:$0xf]
    %v17 = vld [vmem:[%s1 + $0x8] sm:$0xf]
    %v18 = vld [vmem:[%s1 + $0xc] sm:$0xf]
    %v21 = vunpack.c.l.b16 %v13
    %v22 = vunpack.c.l.b16 %v14
    %v23 = vpack.c.b16 %v22, %v21
    %v28 = vunpack.c.l.b16 %v15
    %v29 = vunpack.c.l.b16 %v16
    %v30 = vunpack.c.l.b16 %v17
    %v31 = vunpack.c.l.b16 %v18
    %v32 = vpack.c.b16 %v29, %v28
    %v33 = vpack.c.b16 %v31, %v30
    %vm36 = vcmask 261120
    %v38 = vsel %vm36, %v23, 0
    %40 = vmatprep.subr.bf16.mxu0 0
    %41 = vmatpush1.bf16.msra.mxu0 0
    %42 = vmatprep.subr.bf16.mxu0 0
    %43 = vmatpush1.bf16.msra.mxu0 0
    %44 = vmatprep.subr.bf16.mxu0 0
    %45 = vmatpush1.bf16.msra.mxu0 0
    %46 = vmatprep.subr.bf16.mxu0 0
    %47 = vmatpush1.bf16.msra.mxu0 0
    %48 = vmatprep.subr.bf16.mxu0 0
    %49 = vmatpush1.bf16.msra.mxu0 0
    %50 = vmatprep.subr.bf16.mxu0 0
    %51 = vmatpush1.bf16.msra.mxu0 0
    %52 = vmatprep.subr.bf16.mxu0 0
    %53 = vmatpush1.bf16.msra.mxu0 %v33
    %54 = vmatprep.subr.bf16.mxu0 0
    %55 = vmatpush1.bf16.msra.mxu0 %v32
    %56 = vmatprep.subr.bf16.mxu0 0
    %57 = vmatpush2.bf16.msra.mxu0 0
    %58 = vmatprep.subr.bf16.mxu0 0
    %59 = vmatpush2.bf16.msra.mxu0 0
    %60 = vmatprep.subr.bf16.mxu0 0
    %61 = vmatpush2.bf16.msra.mxu0 0
    %62 = vmatprep.subr.bf16.mxu0 0
    %63 = vmatpush2.bf16.msra.mxu0 0
    %64 = vmatprep.subr.bf16.mxu0 0
    %65 = vmatpush2.bf16.msra.mxu0 0
    %66 = vmatprep.subr.bf16.mxu0 0
    %67 = vmatpush2.bf16.msra.mxu0 0
    %68 = vmatprep.subr.bf16.mxu0 0
    %69 = vmatpush2.bf16.msra.mxu0 0
    %70 = vmatprep.subr.bf16.mxu0 0
    %71 = vmatpush2.bf16.msra.mxu0 0
    %72 = vmatprep.mubr.bf16.mxu0 0
    %73 = vmatmul.mubr.bf16.gmra.mxu0 %v38
    %v74 = vpop.f32.mrf.mxu0
    %v75 = vadd.f32 0.0, %v74
    %v76 = vpop.f32.mrf.mxu0
    %v77 = vpop.f32.mrf.mxu0
    %v78 = vadd.f32 0.0, %v77
    %v79 = vpop.f32.mrf.mxu0
    %80 = vdwg.mxu0
    %vm81 = vcmask 523264
    %82 = vst.msk [vmem:[#allocation2] sm:$0xff] %vm81, %v75
    %83 = vst.msk [vmem:[#allocation2 + $0x8] sm:$0xff] %vm81, %v78
    // Predicated region
    $region10: #{decode.23} parent=1 // pred_check
      _
    $region11: #{decode.23} parent=1 // pred_check_branch
      %85 = sbr.rel (0) target = $region13
    $region12: #{decode.23} parent=1 // pred_region
      %s87 = ssub.s32 256, 256
      %88 = vsyncadd [#allocation3], %s87
      %s89 = sshll.u32 [#allocation2], 4
      %s90 = int_to_ptr.vmem [resolvable:$true] %s89
      %95 = dma.vmem_to_hbm [thread:$0]  %s90, 256, %s2, [#allocation3], 128, 128, 8
    $region13: #{decode.23} parent=1 // pred_fallthru
      _
    // Predicated region
    $region14: #{decode.23} parent=1 // pred_check
      _
    $region15: #{decode.23} parent=1 // pred_check_branch
      %97 = sbr.rel (0) target = $region17
    $region16: #{decode.23} parent=1 // pred_region
      %98 = dma.done [#allocation3], 256
    $region17: #{decode.23} parent=1 // pred_fallthru
      _
    %99 = vsyncpa [#allocation3], 1

</llo_original>
